<compile_context>
chip_gen: v5e
topology: v5e:2x2
jax: 0.10.0
libtpu: 0.0.40
codegen_flags: <defaults>
</compile_context>

<pallas_src>
import jax
import jax.numpy as jnp
from jax.experimental import pallas as pl
from jax.experimental.pallas import tpu as pltpu

jax.config.update("jax_default_matmul_precision", "highest")

NUM_LAYERS = 2
HIDDEN = 32
FEATURES = 32
NUM_CLASS = 2
OUT_PAD = 128            # lane-dense padded logit width
EPS = 1e-15
NEG_INF = -1e30


# ----------------------------- kernels --------------------------------------

def _prolog_kernel(x_ref, w1_ref, b1_ref, wcat_ref, bconv_ref, gx_ref, base_ref):
    # first_lin + ReLU  (dropout p=0.5 is identity in eval mode)
    h = jnp.dot(x_ref[...], w1_ref[...], preferred_element_type=jnp.float32) + b1_ref[...]
    h = jnp.maximum(h, 0.0)
    # fused feature transform for layer 0: [ g(h) | root(h) + fuse*h ]
    t = jnp.dot(h, wcat_ref[...], preferred_element_type=jnp.float32)
    gx_ref[...] = t[:, :HIDDEN].astype(gx_ref.dtype)
    base_ref[...] = t[:, HIDDEN:] + bconv_ref[...]


def _mid_kernel(adj_ref, gxp_ref, basep_ref, wcat_ref, bconv_ref, gx_ref, base_ref):
    # finish previous layer: h = mean-agg(gaussian msgs) + root + bias + fuse*h_prev
    h = jnp.dot(adj_ref[...], gxp_ref[...], preferred_element_type=jnp.float32)
    h = h + basep_ref[...]
    # fused feature transform for this layer (dropout p=0.2 identity in eval mode)
    t = jnp.dot(h, wcat_ref[...], preferred_element_type=jnp.float32)
    gx_ref[...] = t[:, :HIDDEN].astype(gx_ref.dtype)
    base_ref[...] = t[:, HIDDEN:] + bconv_ref[...]


def _final_kernel(adj_ref, gxp_ref, basep_ref, wout_ref, bout_ref, out_ref):
    h = jnp.dot(adj_ref[...], gxp_ref[...], preferred_element_type=jnp.float32)
    h = h + basep_ref[...]
    # output head into a lane-dense padded slab; padded lanes biased to -inf
    logits = jnp.dot(h, wout_ref[...], preferred_element_type=jnp.float32) + bout_ref[...]
    m = jnp.max(logits, axis=-1, keepdims=True)
    s = logits - m
    lse = jnp.log(jnp.sum(jnp.exp(s), axis=-1, keepdims=True))
    out_ref[...] = s - lse


# ----------------------------- wrapper ---------------------------------------

def gmm_forward(x, adj_list, params, *, block_rows=512):
    """x: [N, FEATURES] f32.  adj_list: NUM_LAYERS dense [N, N] bf16 adjacencies."""
    n = x.shape[0]
    tm = min(block_rows, n)
    assert n % tm == 0, "block_rows must divide the number of nodes"
    grid = (n // tm,)
    f32, bf16 = jnp.float32, jnp.bfloat16

    # --- fold module parameters into kernel-friendly weights (cheap glue) ----
    eye = jnp.eye(HIDDEN, dtype=f32)
    # [ wg | wroot + fuse*I ] : one MXU push per feature transform, fuse folded in.
    wcat = [jnp.concatenate(
        [params["wg"][l], params["wroot"][l] + params["fuse"][l] * eye], axis=1)
        for l in range(NUM_LAYERS)]
    bconv = [params["bconv"][l] for l in range(NUM_LAYERS)]
    # lane-dense padded output head; padded logits forced to -inf via the bias.
    w_out_pad = jnp.zeros((HIDDEN, OUT_PAD), f32).at[:, :NUM_CLASS].set(params["w_out"])
    b_out_pad = jnp.full((1, OUT_PAD), NEG_INF, f32).at[:, :NUM_CLASS].set(params["b_out"])

    row_spec = lambda w: pl.BlockSpec((tm, w), lambda i: (i, 0))
    full_spec = lambda a: pl.BlockSpec(a.shape, lambda i: (0,) * a.ndim)

    cparams = pltpu.CompilerParams(
        dimension_semantics=("parallel",),          # split row tiles across TCs
        vmem_limit_bytes=64 * 1024 * 1024,
    )

    feat_out_shape = (jax.ShapeDtypeStruct((n, HIDDEN), bf16),   # gx  (bf16 for MXU / HBM)
                      jax.ShapeDtypeStruct((n, HIDDEN), f32))    # base
    feat_out_specs = (row_spec(HIDDEN), row_spec(HIDDEN))

    # -- layer 0: first_lin + relu + fused feature transform ------------------
    gx, base = pl.pallas_call(
        _prolog_kernel,
        grid=grid,
        in_specs=[row_spec(FEATURES), full_spec(params["w1"]), full_spec(params["b1"]),
                  full_spec(wcat[0]), full_spec(bconv[0])],
        out_specs=feat_out_specs,
        out_shape=feat_out_shape,
        compiler_params=cparams,
    )(x, params["w1"], params["b1"], wcat[0], bconv[0])

    # -- layers 1..L-1: aggregate layer l-1, transform for layer l ------------
    for l in range(1, NUM_LAYERS):
        gx, base = pl.pallas_call(
            _mid_kernel,
            grid=grid,
            in_specs=[pl.BlockSpec((tm, n), lambda i: (i, 0)),        # adj rows (streamed)
                      pl.BlockSpec((n, HIDDEN), lambda i: (0, 0)),    # gx full (resident)
                      row_spec(HIDDEN),
                      full_spec(wcat[l]), full_spec(bconv[l])],
            out_specs=feat_out_specs,
            out_shape=feat_out_shape,
            compiler_params=cparams,
        )(adj_list[l - 1], gx, base, wcat[l], bconv[l])

    # -- final: aggregate last layer, output head + log_softmax ---------------
    out_pad = pl.pallas_call(
        _final_kernel,
        grid=grid,
        in_specs=[pl.BlockSpec((tm, n), lambda i: (i, 0)),
                  pl.BlockSpec((n, HIDDEN), lambda i: (0, 0)),
                  row_spec(HIDDEN),
                  full_spec(w_out_pad), full_spec(b_out_pad)],
        out_specs=pl.BlockSpec((tm, OUT_PAD), lambda i: (i, 0)),
        out_shape=jax.ShapeDtypeStruct((n, OUT_PAD), f32),
        compiler_params=cparams,
    )(adj_list[NUM_LAYERS - 1], gx, base, w_out_pad, b_out_pad)

    return out_pad[:, :NUM_CLASS]


# ----------------------------- glue / params ---------------------------------

def build_adjacency(edge_index, edge_weight, mu, sigma, num_nodes):
    """Dense mean-normalized gaussian adjacency: adj[t, s] for edges s->t (bf16)."""
    # TODO(synk): for large sparse graphs, replace this dense O(N^2) formulation with a
    # CSR / block-sparse gather-aggregate via PrefetchScalarGridSpec.
    src, dst = edge_index[0], edge_index[1]
    gauss = jnp.exp(-0.5 * (edge_weight - mu) ** 2 / (EPS + sigma ** 2))   # [E], K=1, dim=1
    adj = jnp.zeros((num_nodes, num_nodes), jnp.float32).at[dst, src].add(gauss)
    deg = jnp.zeros((num_nodes,), jnp.float32).at[dst].add(1.0)
    adj = adj / jnp.maximum(deg, 1.0)[:, None]
    return adj.astype(jnp.bfloat16)


def init_params(key):
    ks = jax.random.split(key, 8)

    def lin_w(k, fan_in, fan_out):
        bound = 1.0 / jnp.sqrt(fan_in)
        # stored as [in, out] (PyTorch Linear stores [out, in]; pre-transposed)
        return jax.random.uniform(k, (fan_in, fan_out), jnp.float32, -bound, bound)

    def lin_b(k, fan_in, fan_out):
        bound = 1.0 / jnp.sqrt(fan_in)
        return jax.random.uniform(k, (1, fan_out), jnp.float32, -bound, bound)

    return {
        "w1": lin_w(ks[0], FEATURES, HIDDEN),
        "b1": lin_b(ks[1], FEATURES, HIDDEN),
        "wg": jnp.stack([lin_w(jax.random.fold_in(ks[2], l), HIDDEN, HIDDEN)
                         for l in range(NUM_LAYERS)]),
        "wroot": jnp.stack([lin_w(jax.random.fold_in(ks[3], l), HIDDEN, HIDDEN)
                            for l in range(NUM_LAYERS)]),
        "bconv": 0.1 * jax.random.normal(ks[4], (NUM_LAYERS, 1, HIDDEN), jnp.float32),
        "mu": jax.random.normal(ks[5], (NUM_LAYERS,), jnp.float32),
        "sigma": jnp.ones((NUM_LAYERS,), jnp.float32),
        "fuse": jnp.full((NUM_LAYERS,), 1.0 / (NUM_LAYERS + 1), jnp.float32),
        "w_out": lin_w(ks[6], HIDDEN, NUM_CLASS),
        "b_out": lin_b(ks[7], HIDDEN, NUM_CLASS),
    }


def reference_forward(x, adj_list, p):
    """Pure-JAX reference mirroring the PyTorch module (and the bf16 adj/gx casts)."""
    h = jax.nn.relu(x @ p["w1"] + p["b1"])
    for l in range(NUM_LAYERS):
        x_first = h
        gx = (h @ p["wg"][l]).astype(jnp.bfloat16).astype(jnp.float32)
        conv = (adj_list[l].astype(jnp.float32) @ gx
                + h @ p["wroot"][l] + p["bconv"][l])
        h = conv + p["fuse"][l] * x_first
    logits = h @ p["w_out"] + p["b_out"]
    return jax.nn.log_softmax(logits, axis=-1)


# ----------------------------- demo ------------------------------------------

if __name__ == "__main__":
    key = jax.random.PRNGKey(0)
    k_x, k_ei, k_ew, k_p = jax.random.split(key, 4)

    N, E = 256, 2048                 # small, but large enough to exercise row tiling
    x = jax.random.normal(k_x, (N, FEATURES), jnp.float32)
    edge_index = jax.random.randint(k_ei, (2, E), 0, N, jnp.int32)
    edge_weight = jax.random.uniform(k_ew, (E,), jnp.float32)

    params = init_params(k_p)

    # Per-layer dense mean-normalized gaussian adjacency in bf16 (glue outside kernels).
    adj_list = [build_adjacency(edge_index, edge_weight,
                                params["mu"][l], params["sigma"][l], N)
                for l in range(NUM_LAYERS)]

    out = gmm_forward(x, adj_list, params, block_rows=128)   # grid = (2,) per kernel
    out = jax.block_until_ready(out)

    ref = reference_forward(x, adj_list, params)
    assert out.shape == (N, NUM_CLASS)
    max_err = float(jnp.max(jnp.abs(out - ref)))
    assert jnp.allclose(out, ref, atol=2e-2, rtol=2e-2), f"max abs err = {max_err}"

    print("KERNEL_OK")
</pallas_src>

<mosaic_0001>
module attributes {stable_mosaic.version = 11 : i64} {
  func.func @_prolog_kernel(%arg0: i32, %arg1: memref<128x32xf32, #tpu.memory_space<vmem>>, %arg2: memref<32x32xf32, #tpu.memory_space<vmem>>, %arg3: memref<1x32xf32, #tpu.memory_space<vmem>>, %arg4: memref<32x64xf32, #tpu.memory_space<vmem>>, %arg5: memref<1x32xf32, #tpu.memory_space<vmem>>, %arg6: memref<128x32xbf16, #tpu.memory_space<vmem>>, %arg7: memref<128x32xf32, #tpu.memory_space<vmem>>) attributes {dimension_semantics = [#tpu.dimension_semantics<parallel>], iteration_bounds = array<i64: 2>, scalar_prefetch = 0 : i64, scratch_operands = 0 : i64, tpu.core_type = #tpu.core_type<tc>, window_params = [{transform_indices = @transform_0, window_bounds = array<i64: 128, 32>}, {pipeline_mode = #tpu.pipeline_mode<synchronous>, transform_indices = @transform_1, window_bounds = array<i64: 32, 32>}, {pipeline_mode = #tpu.pipeline_mode<synchronous>, transform_indices = @transform_2, window_bounds = array<i64: 1, 32>}, {pipeline_mode = #tpu.pipeline_mode<synchronous>, transform_indices = @transform_3, window_bounds = array<i64: 32, 64>}, {pipeline_mode = #tpu.pipeline_mode<synchronous>, transform_indices = @transform_4, window_bounds = array<i64: 1, 32>}, {transform_indices = @transform_5, window_bounds = array<i64: 128, 32>}, {transform_indices = @transform_6, window_bounds = array<i64: 128, 32>}]} {
    %c0 = arith.constant 0 : index
    %c0_0 = arith.constant 0 : index
    %0 = vector.load %arg1[%c0, %c0_0] : memref<128x32xf32, #tpu.memory_space<vmem>>, vector<128x32xf32>
    %c0_1 = arith.constant 0 : index
    %c0_2 = arith.constant 0 : index
    %1 = vector.load %arg2[%c0_1, %c0_2] : memref<32x32xf32, #tpu.memory_space<vmem>>, vector<32x32xf32>
    %cst = arith.constant dense<0.000000e+00> : vector<128x32xf32>
    %2 = tpu.matmul %0, %1, %cst {dimension_numbers = #tpu.dot_dimension_numbers<[1], [0], [0], [1], [0, 0, 1, 1], [], []>, precision = #tpu.contract_precision<fp32>} : vector<128x32xf32>, vector<32x32xf32>, vector<128x32xf32> -> vector<128x32xf32>
    %c0_3 = arith.constant 0 : index
    %c0_4 = arith.constant 0 : index
    %3 = vector.load %arg3[%c0_3, %c0_4] : memref<1x32xf32, #tpu.memory_space<vmem>>, vector<1x32xf32>
    %4 = vector.broadcast %3 : vector<1x32xf32> to vector<128x32xf32>
    %5 = arith.addf %2, %4 : vector<128x32xf32>
    %cst_5 = arith.constant 0.000000e+00 : f32
    %6 = vector.broadcast %cst_5 : f32 to vector<128x32xf32>
    %7 = arith.maximumf %5, %6 : vector<128x32xf32>
    %c0_6 = arith.constant 0 : index
    %c0_7 = arith.constant 0 : index
    %8 = vector.load %arg4[%c0_6, %c0_7] : memref<32x64xf32, #tpu.memory_space<vmem>>, vector<32x64xf32>
    %cst_8 = arith.constant dense<0.000000e+00> : vector<128x64xf32>
    %9 = tpu.matmul %7, %8, %cst_8 {dimension_numbers = #tpu.dot_dimension_numbers<[1], [0], [0], [1], [0, 0, 1, 1], [], []>, precision = #tpu.contract_precision<fp32>} : vector<128x32xf32>, vector<32x64xf32>, vector<128x64xf32> -> vector<128x64xf32>
    %10 = vector.extract_strided_slice %9 {offsets = [0, 0], sizes = [128, 32], strides = [1, 1]} : vector<128x64xf32> to vector<128x32xf32>
    %11 = arith.truncf %10 : vector<128x32xf32> to vector<128x32xbf16>
    %c0_9 = arith.constant 0 : index
    %c0_10 = arith.constant 0 : index
    %12 = vector.load %arg6[%c0_9, %c0_10] : memref<128x32xbf16, #tpu.memory_space<vmem>>, vector<128x32xbf16>
    tpu.vector_store %arg6[%c0_9, %c0_10], %11 {strides = array<i32>} : memref<128x32xbf16, #tpu.memory_space<vmem>>, vector<128x32xbf16>,
    %13 = vector.extract_strided_slice %9 {offsets = [0, 32], sizes = [128, 32], strides = [1, 1]} : vector<128x64xf32> to vector<128x32xf32>
    %c0_11 = arith.constant 0 : index
    %c0_12 = arith.constant 0 : index
    %14 = vector.load %arg5[%c0_11, %c0_12] : memref<1x32xf32, #tpu.memory_space<vmem>>, vector<1x32xf32>
    %15 = vector.broadcast %14 : vector<1x32xf32> to vector<128x32xf32>
    %16 = arith.addf %13, %15 : vector<128x32xf32>
    %c0_13 = arith.constant 0 : index
    %c0_14 = arith.constant 0 : index
    %17 = vector.load %arg7[%c0_13, %c0_14] : memref<128x32xf32, #tpu.memory_space<vmem>>, vector<128x32xf32>
    tpu.vector_store %arg7[%c0_13, %c0_14], %16 {strides = array<i32>} : memref<128x32xf32, #tpu.memory_space<vmem>>, vector<128x32xf32>,
    return
  }
  func.func @transform_0(%arg0: i32) -> (i32, i32) {
    %c0_i32 = arith.constant 0 : i32
    %c0_i32_0 = arith.constant 0 : i32
    return %arg0, %c0_i32 : i32, i32
  }
  func.func @transform_1(%arg0: i32) -> (i32, i32) {
    %c0_i32 = arith.constant 0 : i32
    %c0_i32_0 = arith.constant 0 : i32
    %c0_i32_1 = arith.constant 0 : i32
    return %c0_i32, %c0_i32_0 : i32, i32
  }
  func.func @transform_2(%arg0: i32) -> (i32, i32) {
    %c0_i32 = arith.constant 0 : i32
    %c0_i32_0 = arith.constant 0 : i32
    %c0_i32_1 = arith.constant 0 : i32
    return %c0_i32, %c0_i32_0 : i32, i32
  }
  func.func @transform_3(%arg0: i32) -> (i32, i32) {
    %c0_i32 = arith.constant 0 : i32
    %c0_i32_0 = arith.constant 0 : i32
    %c0_i32_1 = arith.constant 0 : i32
    return %c0_i32, %c0_i32_0 : i32, i32
  }
  func.func @transform_4(%arg0: i32) -> (i32, i32) {
    %c0_i32 = arith.constant 0 : i32
    %c0_i32_0 = arith.constant 0 : i32
    %c0_i32_1 = arith.constant 0 : i32
    return %c0_i32, %c0_i32_0 : i32, i32
  }
  func.func @transform_5(%arg0: i32) -> (i32, i32) {
    %c0_i32 = arith.constant 0 : i32
    %c0_i32_0 = arith.constant 0 : i32
    return %arg0, %c0_i32 : i32, i32
  }
  func.func @transform_6(%arg0: i32) -> (i32, i32) {
    %c0_i32 = arith.constant 0 : i32
    %c0_i32_0 = arith.constant 0 : i32
    return %arg0, %c0_i32 : i32, i32
  }
}

</mosaic_0001>

<llo_original>
// kernel: tpu_custom_call.1
$region0: #{tpu_custom_call.1}
  #allocation0 [shape = 'u32[]', space=smem, size = 0x4, offset = 0x4, fixed_abs, tag = 'smem constant byte address 0x4 - core index']
  #allocation1 [shape = 'u32[72,128]{1,0:T(1,128)}', space=vmem, size = 0x9000, scoped, tag = 'internal scratch']
  %s0 = inlined_call_operand.vmem [shape: f32[256,32], index: 0, kind: input, shape index: {}]
  %s1 = inlined_call_operand.vmem [shape: f32[32,32], index: 1, kind: input, shape index: {}]
  %s2 = inlined_call_operand.vmem [shape: f32[1,32], index: 2, kind: input, shape index: {}]
  %s3 = inlined_call_operand.vmem [shape: f32[32,64], index: 3, kind: input, shape index: {}]
  %s4 = inlined_call_operand.vmem [shape: f32[1,32], index: 4, kind: input, shape index: {}]
  %s5 = inlined_call_operand.vmem [shape: bf16[256,32], index: 5, kind: output, shape index: {0}]
  %s6 = inlined_call_operand.vmem [shape: f32[256,32], index: 6, kind: output, shape index: {1}]
  %7 = xla_tuple %s5, %s6
  %s8 = sld [smem:[#allocation0]]
  $region61: #{tpu_custom_call.1} parent=0
    _
  %s10 = ssub.s32 1, %s8
  %s11 = scalar_select 0, %s10, %s8
  loop: start=0, step=1, limit=4
  $region2: #{tpu_custom_call.1} parent=0 // loop_pre_header
    _
  $region3: #{tpu_custom_call.1} parent=0 // loop_header
    %s13 = sphi 0, %s17
    %p14 = scmp.ge.s32.totalorder %s13, 4
    %s23 = sphi 0, %s25
    %s26 = sphi 0, %s23
    %s27 = sphi 0, %s26
    %s43 = sphi 0, %s27
    %s47 = sphi 0, %s47
    %s49 = sphi 0, %s47
    %s50 = sphi 0, %s49
    %s64 = sphi 0, %s50
    %s68 = sphi 0, %s68
    %s70 = sphi 0, %s68
    %s71 = sphi 0, %s70
    %s85 = sphi 0, %s71
    %s89 = sphi 0, %s89
    %s91 = sphi 0, %s89
    %s92 = sphi 0, %s91
    %s106 = sphi 0, %s92
    %s110 = sphi 0, %s110
    %s112 = sphi 0, %s110
    %s113 = sphi 0, %s112
    %s127 = sphi 0, %s113
    %s133 = sphi 0, %s135
    %s136 = sphi 0, %s133
    %s137 = sphi 0, %s136
    %s153 = sphi 0, %s137
    %s159 = sphi 0, %s161
    %s162 = sphi 0, %s159
    %s163 = sphi 0, %s162
    %s179 = sphi 0, %s163
  $region4: #{tpu_custom_call.1} parent=0 // loop_header_branch
    %16 = sbr.rel (%p14) target = $region8
  $region5: #{tpu_custom_call.1} parent=0 // loop_body
    %s18 = ssub.s32 %s13, 1
    %s19 = ssub.s32 %s13, 2
    %s20 = sadd.s32 %s13, 1
    %s21 = ssub.s32 %s13, %s20
    %p22 = scmp.eq.s32.totalorder %s21, 0
    %s24 = sadd.s32 %s23, 1
    %s25 = scalar_select %p22, %s23, %s24
    %p28 = pneg %p22
    %p29 = scmp.eq.s32.totalorder %s13, 1
    %p30 = por %p28, %p29
    %p31 = scmp.ne.s32.totalorder %s23, %s26
    %p32 = scmp.eq.s32.totalorder %s13, 0
    %p33 = por %p31, %p32
    %p34 = scmp.ne.s32.totalorder %s23, %s26
    %p35 = scmp.eq.s32.totalorder %s18, 1
    %p36 = por %p34, %p35
    %p37 = scmp.ne.s32.totalorder %s26, %s27
    %p38 = scmp.eq.s32.totalorder %s18, 0
    %p39 = por %p37, %p38
    %p40 = scmp.ne.s32.totalorder %s26, %s27
    %p41 = scmp.eq.s32.totalorder %s19, 1
    %p42 = por %p40, %p41
    %p44 = scmp.ne.s32.totalorder %s27, %s43
    %p45 = scmp.eq.s32.totalorder %s19, 0
    %p46 = por %p44, %p45
    %s48 = sadd.s32 %s47, 1
    %p51 = scmp.eq.s32.totalorder %s13, 1
    %p52 = scmp.ne.s32.totalorder %s47, %s49
    %p53 = scmp.eq.s32.totalorder %s13, 0
    %p54 = por %p52, %p53
    %p55 = scmp.ne.s32.totalorder %s47, %s49
    %p56 = scmp.eq.s32.totalorder %s18, 1
    %p57 = por %p55, %p56
    %p58 = scmp.ne.s32.totalorder %s49, %s50
    %p59 = scmp.eq.s32.totalorder %s18, 0
    %p60 = por %p58, %p59
    %p61 = scmp.ne.s32.totalorder %s49, %s50
    %p62 = scmp.eq.s32.totalorder %s19, 1
    %p63 = por %p61, %p62
    %p65 = scmp.ne.s32.totalorder %s50, %s64
    %p66 = scmp.eq.s32.totalorder %s19, 0
    %p67 = por %p65, %p66
    %s69 = sadd.s32 %s68, 1
    %p72 = scmp.eq.s32.totalorder %s13, 1
    %p73 = scmp.ne.s32.totalorder %s68, %s70
    %p74 = scmp.eq.s32.totalorder %s13, 0
    %p75 = por %p73, %p74
    %p76 = scmp.ne.s32.totalorder %s68, %s70
    %p77 = scmp.eq.s32.totalorder %s18, 1
    %p78 = por %p76, %p77
    %p79 = scmp.ne.s32.totalorder %s70, %s71
    %p80 = scmp.eq.s32.totalorder %s18, 0
    %p81 = por %p79, %p80
    %p82 = scmp.ne.s32.totalorder %s70, %s71
    %p83 = scmp.eq.s32.totalorder %s19, 1
    %p84 = por %p82, %p83
    %p86 = scmp.ne.s32.totalorder %s71, %s85
    %p87 = scmp.eq.s32.totalorder %s19, 0
    %p88 = por %p86, %p87
    %s90 = sadd.s32 %s89, 1
    %p93 = scmp.eq.s32.totalorder %s13, 1
    %p94 = scmp.ne.s32.totalorder %s89, %s91
    %p95 = scmp.eq.s32.totalorder %s13, 0
    %p96 = por %p94, %p95
    %p97 = scmp.ne.s32.totalorder %s89, %s91
    %p98 = scmp.eq.s32.totalorder %s18, 1
    %p99 = por %p97, %p98
    %p100 = scmp.ne.s32.totalorder %s91, %s92
    %p101 = scmp.eq.s32.totalorder %s18, 0
    %p102 = por %p100, %p101
    %p103 = scmp.ne.s32.totalorder %s91, %s92
    %p104 = scmp.eq.s32.totalorder %s19, 1
    %p105 = por %p103, %p104
    %p107 = scmp.ne.s32.totalorder %s92, %s106
    %p108 = scmp.eq.s32.totalorder %s19, 0
    %p109 = por %p107, %p108
    %s111 = sadd.s32 %s110, 1
    %p114 = scmp.eq.s32.totalorder %s13, 1
    %p115 = scmp.ne.s32.totalorder %s110, %s112
    %p116 = scmp.eq.s32.totalorder %s13, 0
    %p117 = por %p115, %p116
    %p118 = scmp.ne.s32.totalorder %s110, %s112
    %p119 = scmp.eq.s32.totalorder %s18, 1
    %p120 = por %p118, %p119
    %p121 = scmp.ne.s32.totalorder %s112, %s113
    %p122 = scmp.eq.s32.totalorder %s18, 0
    %p123 = por %p121, %p122
    %p124 = scmp.ne.s32.totalorder %s112, %s113
    %p125 = scmp.eq.s32.totalorder %s19, 1
    %p126 = por %p124, %p125
    %p128 = scmp.ne.s32.totalorder %s113, %s127
    %p129 = scmp.eq.s32.totalorder %s19, 0
    %p130 = por %p128, %p129
    %s131 = ssub.s32 %s13, %s20
    %p132 = scmp.eq.s32.totalorder %s131, 0
    %s134 = sadd.s32 %s133, 1
    %s135 = scalar_select %p132, %s133, %s134
    %p138 = pneg %p132
    %p139 = scmp.eq.s32.totalorder %s13, 1
    %p140 = por %p138, %p139
    %p141 = scmp.ne.s32.totalorder %s133, %s136
    %p142 = scmp.eq.s32.totalorder %s13, 0
    %p143 = por %p141, %p142
    %p144 = scmp.ne.s32.totalorder %s133, %s136
    %p145 = scmp.eq.s32.totalorder %s18, 1
    %p146 = por %p144, %p145
    %p147 = scmp.ne.s32.totalorder %s136, %s137
    %p148 = scmp.eq.s32.totalorder %s18, 0
    %p149 = por %p147, %p148
    %p150 = scmp.ne.s32.totalorder %s136, %s137
    %p151 = scmp.eq.s32.totalorder %s19, 1
    %p152 = por %p150, %p151
    %p154 = scmp.ne.s32.totalorder %s137, %s153
    %p155 = scmp.eq.s32.totalorder %s19, 0
    %p156 = por %p154, %p155
    %s157 = ssub.s32 %s13, %s20
    %p158 = scmp.eq.s32.totalorder %s157, 0
    %s160 = sadd.s32 %s159, 1
    %s161 = scalar_select %p158, %s159, %s160
    %p164 = pneg %p158
    %p165 = scmp.eq.s32.totalorder %s13, 1
    %p166 = por %p164, %p165
    %p167 = scmp.ne.s32.totalorder %s159, %s162
    %p168 = scmp.eq.s32.totalorder %s13, 0
    %p169 = por %p167, %p168
    %p170 = scmp.ne.s32.totalorder %s159, %s162
    %p171 = scmp.eq.s32.totalorder %s18, 1
    %p172 = por %p170, %p171
    %p173 = scmp.ne.s32.totalorder %s162, %s163
    %p174 = scmp.eq.s32.totalorder %s18, 0
    %p175 = por %p173, %p174
    %p176 = scmp.ne.s32.totalorder %s162, %s163
    %p177 = scmp.eq.s32.totalorder %s19, 1
    %p178 = por %p176, %p177
    %p180 = scmp.ne.s32.totalorder %s163, %s179
    %p181 = scmp.eq.s32.totalorder %s19, 0
    %p182 = por %p180, %p181
    %p183 = scmp.le.s32.totalorder 1, %s13
    %p184 = scmp.lt.s32.totalorder %s13, 3
    %p185 = pnand %p183, %p184
    %p186 = pneg %p185
    // Predicated region
    $region9: #{tpu_custom_call.1} parent=5 // pred_check
      _
    $region10: #{tpu_custom_call.1} parent=5 // pred_check_branch
      %188 = sbr.rel (%p185) target = $region12
    $region11: #{tpu_custom_call.1} parent=5 // pred_region
      %s189 = ssub.s32 %s13, 1
      // Predicated region
      $region13: #{tpu_custom_call.1} parent=11 // pred_check
        %p190 = pneg %p60
      $region14: #{tpu_custom_call.1} parent=11 // pred_check_branch
        %192 = sbr.rel (%p190) target = $region16
      $region15: #{tpu_custom_call.1} parent=11 // pred_region
        _
      $region16: #{tpu_custom_call.1} parent=11 // pred_fallthru
        _
      // Predicated region
      $region17: #{tpu_custom_call.1} parent=11 // pred_check
        %p193 = pneg %p81
      $region18: #{tpu_custom_call.1} parent=11 // pred_check_branch
        %195 = sbr.rel (%p193) target = $region20
      $region19: #{tpu_custom_call.1} parent=11 // pred_region
        _
      $region20: #{tpu_custom_call.1} parent=11 // pred_fallthru
        _
      // Predicated region
      $region21: #{tpu_custom_call.1} parent=11 // pred_check
        %p196 = pneg %p102
      $region22: #{tpu_custom_call.1} parent=11 // pred_check_branch
        %198 = sbr.rel (%p196) target = $region24
      $region23: #{tpu_custom_call.1} parent=11 // pred_region
        _
      $region24: #{tpu_custom_call.1} parent=11 // pred_fallthru
        _
      // Predicated region
      $region25: #{tpu_custom_call.1} parent=11 // pred_check
        %p199 = pneg %p123
      $region26: #{tpu_custom_call.1} parent=11 // pred_check_branch
        %201 = sbr.rel (%p199) target = $region28
      $region27: #{tpu_custom_call.1} parent=11 // pred_region
        _
      $region28: #{tpu_custom_call.1} parent=11 // pred_fallthru
        _
    $region12: #{tpu_custom_call.1} parent=5 // pred_fallthru
      _
    %p202 = scmp.lt.s32.totalorder %s13, 2
    // Predicated region
    $region29: #{tpu_custom_call.1} parent=5 // pred_check
      %p203 = pneg %p202
    $region30: #{tpu_custom_call.1} parent=5 // pred_check_branch
      %205 = sbr.rel (%p203) target = $region32
    $region31: #{tpu_custom_call.1} parent=5 // pred_region
      // Predicated region
      $region33: #{tpu_custom_call.1} parent=31 // pred_check
        %p206 = pneg %p33
      $region34: #{tpu_custom_call.1} parent=31 // pred_check_branch
        %208 = sbr.rel (%p206) target = $region36
      $region35: #{tpu_custom_call.1} parent=31 // pred_region
        %s209 = smul.u32 16, %s13
        %p210 = scmp.lt.s32.totalorder %s209, 31
        %s211 = scalar_select %p210, %s209, 31
        %s212 = smul.addr %s211, 8
        %s213 = scalar_lea.vmem %s0, %s212
        %s214 = smul.u32 16, %s13
      $region36: #{tpu_custom_call.1} parent=31 // pred_fallthru
        _
    $region32: #{tpu_custom_call.1} parent=5 // pred_fallthru
      _
    %p215 = scmp.le.s32.totalorder 1, %s13
    %p216 = scmp.lt.s32.totalorder %s13, 3
    %p217 = pnand %p215, %p216
    %p218 = pneg %p217
    // Predicated region
    $region37: #{tpu_custom_call.1} parent=5 // pred_check
      _
    $region38: #{tpu_custom_call.1} parent=5 // pred_check_branch
      %220 = sbr.rel (%p217) target = $region40
    $region39: #{tpu_custom_call.1} parent=5 // pred_region
      %s221 = ssub.s32 %s13, 1
      %s222 = smul.u32 16, %s18
      %p223 = scmp.lt.s32.totalorder %s222, 31
      %s224 = scalar_select %p223, %s222, 31
      %s225 = smul.addr %s224, 8
      %s226 = scalar_lea.vmem %s0, %s225
      %p227 = pneg %p39
      %p228 = pneg %p36
      %p229 = pneg %p60
      %p230 = pneg %p57
      %p231 = pneg %p81
      %p232 = pneg %p78
      %p233 = pneg %p102
      %p234 = pneg %p99
      %p235 = pneg %p123
      %p236 = pneg %p120
      %p237 = pneg %p149
      %p238 = pneg %p146
      %s239 = smul.u32 16, %s18
      %p240 = scmp.lt.s32.totalorder %s239, 31
      %s241 = scalar_select %p240, %s239, 31
      %s242 = smul.addr %s241, 4
      %s243 = scalar_lea.vmem %s5, %s242
      %p244 = pneg %p175
      %p245 = pneg %p172
      %s246 = smul.u32 16, %s18
      %p247 = scmp.lt.s32.totalorder %s246, 31
      %s248 = scalar_select %p247, %s246, 31
      %s249 = smul.addr %s248, 8
      %s250 = scalar_lea.vmem %s6, %s249
      %s251 = smul.u32 16, %s18
      %p252 = scmp.lt.s32.totalorder %s251, 31
      %s253 = scalar_select %p252, %s251, 31
      %s254 = smul.addr %s253, 8
      %s255 = scalar_lea.vmem %s0, %s254
      %s256 = smul.u32 16, %s18
      %s257 = smul.u32 16, %s18
      %p258 = scmp.lt.s32.totalorder %s257, 31
      %s259 = scalar_select %p258, %s257, 31
      %s260 = smul.addr %s259, 4
      %s261 = scalar_lea.vmem %s5, %s260
      %s262 = smul.u32 16, %s18
      %s263 = smul.u32 16, %s18
      %p264 = scmp.lt.s32.totalorder %s263, 31
      %s265 = scalar_select %p264, %s263, 31
      %s266 = smul.addr %s265, 8
      %s267 = scalar_lea.vmem %s6, %s266
      %s268 = smul.u32 16, %s18
      %v269 = vld [vmem:[%s255] sm:$0xff]
      %v270 = vld [vmem:[%s255 + $0x8] sm:$0xff]
      %v271 = vld [vmem:[%s255 + $0x10] sm:$0xff]
      %v272 = vld [vmem:[%s255 + $0x18] sm:$0xff]
      %v273 = vld [vmem:[%s255 + $0x20] sm:$0xff]
      %v274 = vld [vmem:[%s255 + $0x28] sm:$0xff]
      %v275 = vld [vmem:[%s255 + $0x30] sm:$0xff]
      %v276 = vld [vmem:[%s255 + $0x38] sm:$0xff]
      %v277 = vld [vmem:[%s255 + $0x40] sm:$0xff]
      %v278 = vld [vmem:[%s255 + $0x48] sm:$0xff]
      %v279 = vld [vmem:[%s255 + $0x50] sm:$0xff]
      %v280 = vld [vmem:[%s255 + $0x58] sm:$0xff]
      %v281 = vld [vmem:[%s255 + $0x60] sm:$0xff]
      %v282 = vld [vmem:[%s255 + $0x68] sm:$0xff]
      %v283 = vld [vmem:[%s255 + $0x70] sm:$0xff]
      %v284 = vld [vmem:[%s255 + $0x78] sm:$0xff]
      %v285 = vld [vmem:[%s1] sm:$0xff]
      %v286 = vld [vmem:[%s1 + $0x8] sm:$0xff]
      %v287 = vld [vmem:[%s1 + $0x10] sm:$0xff]
      %v288 = vld [vmem:[%s1 + $0x18] sm:$0xff]
      %v289 = vld [vmem:[%s2] sm:$0x1]
      %v291 = vperm.slane %v289, 0
      %vm293 = vcmask 261120
      %v295 = vsel %vm293, %v269, 0
      %v298 = vsel %vm293, %v270, 0
      %v301 = vsel %vm293, %v271, 0
      %v304 = vsel %vm293, %v272, 0
      %v307 = vsel %vm293, %v273, 0
      %v310 = vsel %vm293, %v274, 0
      %v313 = vsel %vm293, %v275, 0
      %v316 = vsel %vm293, %v276, 0
      %v319 = vsel %vm293, %v277, 0
      %v322 = vsel %vm293, %v278, 0
      %v325 = vsel %vm293, %v279, 0
      %v328 = vsel %vm293, %v280, 0
      %v331 = vsel %vm293, %v281, 0
      %v334 = vsel %vm293, %v282, 0
      %v337 = vsel %vm293, %v283, 0
      %v340 = vsel %vm293, %v284, 0
      %342 = vmatpush.msra.mxu0 0.0
      %343 = vmatpush.msra.mxu0 0.0
      %344 = vmatpush.msra.mxu0 0.0
      %345 = vmatpush.msra.mxu0 0.0
      %346 = vmatpush.msra.mxu0 0.0
      %347 = vmatpush.msra.mxu0 0.0
      %348 = vmatpush.msra.mxu0 0.0
      %349 = vmatpush.msra.mxu0 0.0
      %350 = vmatpush.msra.mxu0 0.0
      %351 = vmatpush.msra.mxu0 0.0
      %352 = vmatpush.msra.mxu0 0.0
      %353 = vmatpush.msra.mxu0 0.0
      %v354 = vand.u32 %v288, 4294901760
      %355 = vmatpush.msra.mxu0 %v354
      %v356 = vand.u32 %v287, 4294901760
      %357 = vmatpush.msra.mxu0 %v356
      %v358 = vand.u32 %v286, 4294901760
      %359 = vmatpush.msra.mxu0 %v358
      %v360 = vand.u32 %v285, 4294901760
      %361 = vmatpush.msra.mxu0 %v360
      %v362 = vand.u32 %v295, 4294901760
      %v363 = vsub.f32 %v295, %v362
      %v364 = vand.u32 %v363, 4294901760
      %v365 = vsub.f32 %v363, %v364
      %v366 = vand.u32 %v365, 4294901760
      %367 = vmatmul.f32.gmra.mxu0 %v366
      %v368 = vpop.f32.mrf.mxu0
      %v369 = vadd.f32 %v291, %v368
      %v370 = vand.u32 %v298, 4294901760
      %v371 = vsub.f32 %v298, %v370
      %v372 = vand.u32 %v371, 4294901760
      %v373 = vsub.f32 %v371, %v372
      %v374 = vand.u32 %v373, 4294901760
      %375 = vmatmul.f32.gmra.mxu0 %v374
      %v376 = vpop.f32.mrf.mxu0
      %v377 = vadd.f32 %v291, %v376
      %v378 = vand.u32 %v301, 4294901760
      %v379 = vsub.f32 %v301, %v378
      %v380 = vand.u32 %v379, 4294901760
      %v381 = vsub.f32 %v379, %v380
      %v382 = vand.u32 %v381, 4294901760
      %383 = vmatmul.f32.gmra.mxu0 %v382
      %v384 = vpop.f32.mrf.mxu0
      %v385 = vadd.f32 %v291, %v384
      %v386 = vand.u32 %v304, 4294901760
      %v387 = vsub.f32 %v304, %v386
      %v388 = vand.u32 %v387, 4294901760
      %v389 = vsub.f32 %v387, %v388
      %v390 = vand.u32 %v389, 4294901760
      %391 = vmatmul.f32.gmra.mxu0 %v390
      %v392 = vpop.f32.mrf.mxu0
      %v393 = vadd.f32 %v291, %v392
      %v394 = vand.u32 %v307, 4294901760
      %v395 = vsub.f32 %v307, %v394
      %v396 = vand.u32 %v395, 4294901760
      %v397 = vsub.f32 %v395, %v396
      %v398 = vand.u32 %v397, 4294901760
      %399 = vmatmul.f32.gmra.mxu0 %v398
      %v400 = vpop.f32.mrf.mxu0
      %v401 = vadd.f32 %v291, %v400
      %v402 = vand.u32 %v310, 4294901760
      %v403 = vsub.f32 %v310, %v402
      %v404 = vand.u32 %v403, 4294901760
      %v405 = vsub.f32 %v403, %v404
      %v406 = vand.u32 %v405, 4294901760
      %407 = vmatmul.f32.gmra.mxu0 %v406
      %v408 = vpop.f32.mrf.mxu0
      %v409 = vadd.f32 %v291, %v408
      %v410 = vand.u32 %v313, 4294901760
      %v411 = vsub.f32 %v313, %v410
      %v412 = vand.u32 %v411, 4294901760
      %v413 = vsub.f32 %v411, %v412
      %v414 = vand.u32 %v413, 4294901760
      %415 = vmatmul.f32.gmra.mxu0 %v414
      %v416 = vpop.f32.mrf.mxu0
      %v417 = vadd.f32 %v291, %v416
      %v418 = vand.u32 %v316, 4294901760
      %v419 = vsub.f32 %v316, %v418
      %v420 = vand.u32 %v419, 4294901760
      %v421 = vsub.f32 %v419, %v420
      %v422 = vand.u32 %v421, 4294901760
      %423 = vmatmul.f32.gmra.mxu0 %v422
      %v424 = vpop.f32.mrf.mxu0
      %v425 = vadd.f32 %v291, %v424
      %v426 = vand.u32 %v319, 4294901760
      %v427 = vsub.f32 %v319, %v426
      %v428 = vand.u32 %v427, 4294901760
      %v429 = vsub.f32 %v427, %v428
      %v430 = vand.u32 %v429, 4294901760
      %431 = vmatmul.f32.gmra.mxu0 %v430
      %v432 = vpop.f32.mrf.mxu0
      %v433 = vadd.f32 %v291, %v432
      %v434 = vand.u32 %v322, 4294901760
      %v435 = vsub.f32 %v322, %v434
      %v436 = vand.u32 %v435, 4294901760
      %v437 = vsub.f32 %v435, %v436
      %v438 = vand.u32 %v437, 4294901760
      %439 = vmatmul.f32.gmra.mxu0 %v438
      %v440 = vpop.f32.mrf.mxu0
      %v441 = vadd.f32 %v291, %v440
      %v442 = vand.u32 %v325, 4294901760
      %v443 = vsub.f32 %v325, %v442
      %v444 = vand.u32 %v443, 4294901760
      %v445 = vsub.f32 %v443, %v444
      %v446 = vand.u32 %v445, 4294901760
      %447 = vmatmul.f32.gmra.mxu0 %v446
      %v448 = vpop.f32.mrf.mxu0
      %v449 = vadd.f32 %v291, %v448
      %v450 = vand.u32 %v328, 4294901760
      %v451 = vsub.f32 %v328, %v450
      %v452 = vand.u32 %v451, 4294901760
      %v453 = vsub.f32 %v451, %v452
      %v454 = vand.u32 %v453, 4294901760
      %455 = vmatmul.f32.gmra.mxu0 %v454
      %v456 = vpop.f32.mrf.mxu0
      %v457 = vadd.f32 %v291, %v456
      %v458 = vand.u32 %v331, 4294901760
      %v459 = vsub.f32 %v331, %v458
      %v460 = vand.u32 %v459, 4294901760
      %v461 = vsub.f32 %v459, %v460
      %v462 = vand.u32 %v461, 4294901760
      %463 = vmatmul.f32.gmra.mxu0 %v462
      %v464 = vpop.f32.mrf.mxu0
      %v465 = vadd.f32 %v291, %v464
      %v466 = vand.u32 %v334, 4294901760
      %v467 = vsub.f32 %v334, %v466
      %v468 = vand.u32 %v467, 4294901760
      %v469 = vsub.f32 %v467, %v468
      %v470 = vand.u32 %v469, 4294901760
      %471 = vmatmul.f32.gmra.mxu0 %v470
      %v472 = vpop.f32.mrf.mxu0
      %v473 = vadd.f32 %v291, %v472
      %v474 = vand.u32 %v337, 4294901760
      %v475 = vsub.f32 %v337, %v474
      %v476 = vand.u32 %v475, 4294901760
      %v477 = vsub.f32 %v475, %v476
      %v478 = vand.u32 %v477, 4294901760
      %479 = vmatmul.f32.gmra.mxu0 %v478
      %v480 = vpop.f32.mrf.mxu0
      %v481 = vadd.f32 %v291, %v480
      %v482 = vand.u32 %v340, 4294901760
      %v483 = vsub.f32 %v340, %v482
      %v484 = vand.u32 %v483, 4294901760
      %v485 = vsub.f32 %v483, %v484
      %v486 = vand.u32 %v485, 4294901760
      %487 = vmatmul.f32.gmra.mxu0 %v486
      %v488 = vpop.f32.mrf.mxu0
      %v489 = vadd.f32 %v291, %v488
      %490 = vdwg.mxu0
      %491 = vmatpush.msra.mxu0 0.0
      %492 = vmatpush.msra.mxu0 0.0
      %493 = vmatpush.msra.mxu0 0.0
      %494 = vmatpush.msra.mxu0 0.0
      %495 = vmatpush.msra.mxu0 0.0
      %496 = vmatpush.msra.mxu0 0.0
      %497 = vmatpush.msra.mxu0 0.0
      %498 = vmatpush.msra.mxu0 0.0
      %499 = vmatpush.msra.mxu0 0.0
      %500 = vmatpush.msra.mxu0 0.0
      %501 = vmatpush.msra.mxu0 0.0
      %502 = vmatpush.msra.mxu0 0.0
      %v503 = vand.u32 %v288, 4294901760
      %v504 = vsub.f32 %v288, %v503
      %v505 = vand.u32 %v504, 4294901760
      %v506 = vsub.f32 %v504, %v505
      %v507 = vand.u32 %v506, 4294901760
      %508 = vmatpush.msra.mxu0 %v507
      %v509 = vand.u32 %v287, 4294901760
      %v510 = vsub.f32 %v287, %v509
      %v511 = vand.u32 %v510, 4294901760
      %v512 = vsub.f32 %v510, %v511
      %v513 = vand.u32 %v512, 4294901760
      %514 = vmatpush.msra.mxu0 %v513
      %v515 = vand.u32 %v286, 4294901760
      %v516 = vsub.f32 %v286, %v515
      %v517 = vand.u32 %v516, 4294901760
      %v518 = vsub.f32 %v516, %v517
      %v519 = vand.u32 %v518, 4294901760
      %520 = vmatpush.msra.mxu0 %v519
      %v521 = vand.u32 %v285, 4294901760
      %v522 = vsub.f32 %v285, %v521
      %v523 = vand.u32 %v522, 4294901760
      %v524 = vsub.f32 %v522, %v523
      %v525 = vand.u32 %v524, 4294901760
      %526 = vmatpush.msra.mxu0 %v525
      %v527 = vand.u32 %v295, 4294901760
      %528 = vmatmul.f32.gmra.mxu0 %v527
      %v529 = vpop.f32.mrf.mxu0
      %v530 = vadd.f32 %v369, %v529
      %v531 = vand.u32 %v298, 4294901760
      %532 = vmatmul.f32.gmra.mxu0 %v531
      %v533 = vpop.f32.mrf.mxu0
      %v534 = vadd.f32 %v377, %v533
      %v535 = vand.u32 %v301, 4294901760
      %536 = vmatmul.f32.gmra.mxu0 %v535
      %v537 = vpop.f32.mrf.mxu0
      %v538 = vadd.f32 %v385, %v537
      %v539 = vand.u32 %v304, 4294901760
      %540 = vmatmul.f32.gmra.mxu0 %v539
      %v541 = vpop.f32.mrf.mxu0
      %v542 = vadd.f32 %v393, %v541
      %v543 = vand.u32 %v307, 4294901760
      %544 = vmatmul.f32.gmra.mxu0 %v543
      %v545 = vpop.f32.mrf.mxu0
      %v546 = vadd.f32 %v401, %v545
      %v547 = vand.u32 %v310, 4294901760
      %548 = vmatmul.f32.gmra.mxu0 %v547
      %v549 = vpop.f32.mrf.mxu0
      %v550 = vadd.f32 %v409, %v549
      %v551 = vand.u32 %v313, 4294901760
      %552 = vmatmul.f32.gmra.mxu0 %v551
      %v553 = vpop.f32.mrf.mxu0
      %v554 = vadd.f32 %v417, %v553
      %v555 = vand.u32 %v316, 4294901760
      %556 = vmatmul.f32.gmra.mxu0 %v555
      %v557 = vpop.f32.mrf.mxu0
      %v558 = vadd.f32 %v425, %v557
      %v559 = vand.u32 %v319, 4294901760
      %560 = vmatmul.f32.gmra.mxu0 %v559
      %v561 = vpop.f32.mrf.mxu0
      %v562 = vadd.f32 %v433, %v561
      %v563 = vand.u32 %v322, 4294901760
      %564 = vmatmul.f32.gmra.mxu0 %v563
      %v565 = vpop.f32.mrf.mxu0
      %v566 = vadd.f32 %v441, %v565
      %v567 = vand.u32 %v325, 4294901760
      %568 = vmatmul.f32.gmra.mxu0 %v567
      %v569 = vpop.f32.mrf.mxu0
      %v570 = vadd.f32 %v449, %v569
      %v571 = vand.u32 %v328, 4294901760
      %572 = vmatmul.f32.gmra.mxu0 %v571
      %v573 = vpop.f32.mrf.mxu0
      %v574 = vadd.f32 %v457, %v573
      %v575 = vand.u32 %v331, 4294901760
      %576 = vmatmul.f32.gmra.mxu0 %v575
      %v577 = vpop.f32.mrf.mxu0
      %v578 = vadd.f32 %v465, %v577
      %v579 = vand.u32 %v334, 4294901760
      %580 = vmatmul.f32.gmra.mxu0 %v579
      %v581 = vpop.f32.mrf.mxu0
      %v582 = vadd.f32 %v473, %v581
      %v583 = vand.u32 %v337, 4294901760
      %584 = vmatmul.f32.gmra.mxu0 %v583
      %v585 = vpop.f32.mrf.mxu0
      %v586 = vadd.f32 %v481, %v585
      %v587 = vand.u32 %v340, 4294901760
      %588 = vmatmul.f32.gmra.mxu0 %v587
      %v589 = vpop.f32.mrf.mxu0
      %v590 = vadd.f32 %v489, %v589
      %591 = vdwg.mxu0
      %592 = vmatpush.msra.mxu0 0.0
      %593 = vmatpush.msra.mxu0 0.0
      %594 = vmatpush.msra.mxu0 0.0
      %595 = vmatpush.msra.mxu0 0.0
      %596 = vmatpush.msra.mxu0 0.0
      %597 = vmatpush.msra.mxu0 0.0
      %598 = vmatpush.msra.mxu0 0.0
      %599 = vmatpush.msra.mxu0 0.0
      %600 = vmatpush.msra.mxu0 0.0
      %601 = vmatpush.msra.mxu0 0.0
      %602 = vmatpush.msra.mxu0 0.0
      %603 = vmatpush.msra.mxu0 0.0
      %v604 = vand.u32 %v288, 4294901760
      %v605 = vsub.f32 %v288, %v604
      %606 = vmatpush.msra.mxu0 %v605
      %v607 = vand.u32 %v287, 4294901760
      %v608 = vsub.f32 %v287, %v607
      %609 = vmatpush.msra.mxu0 %v608
      %v610 = vand.u32 %v286, 4294901760
      %v611 = vsub.f32 %v286, %v610
      %612 = vmatpush.msra.mxu0 %v611
      %v613 = vand.u32 %v285, 4294901760
      %v614 = vsub.f32 %v285, %v613
      %615 = vmatpush.msra.mxu0 %v614
      %v616 = vand.u32 %v295, 4294901760
      %v617 = vsub.f32 %v295, %v616
      %618 = vmatmul.f32.gmra.mxu0 %v617
      %v619 = vpop.f32.mrf.mxu0
      %v620 = vadd.f32 %v530, %v619
      %v621 = vand.u32 %v298, 4294901760
      %v622 = vsub.f32 %v298, %v621
      %623 = vmatmul.f32.gmra.mxu0 %v622
      %v624 = vpop.f32.mrf.mxu0
      %v625 = vadd.f32 %v534, %v624
      %v626 = vand.u32 %v301, 4294901760
      %v627 = vsub.f32 %v301, %v626
      %628 = vmatmul.f32.gmra.mxu0 %v627
      %v629 = vpop.f32.mrf.mxu0
      %v630 = vadd.f32 %v538, %v629
      %v631 = vand.u32 %v304, 4294901760
      %v632 = vsub.f32 %v304, %v631
      %633 = vmatmul.f32.gmra.mxu0 %v632
      %v634 = vpop.f32.mrf.mxu0
      %v635 = vadd.f32 %v542, %v634
      %v636 = vand.u32 %v307, 4294901760
      %v637 = vsub.f32 %v307, %v636
      %638 = vmatmul.f32.gmra.mxu0 %v637
      %v639 = vpop.f32.mrf.mxu0
      %v640 = vadd.f32 %v546, %v639
      %v641 = vand.u32 %v310, 4294901760
      %v642 = vsub.f32 %v310, %v641
      %643 = vmatmul.f32.gmra.mxu0 %v642
      %v644 = vpop.f32.mrf.mxu0
      %v645 = vadd.f32 %v550, %v644
      %v646 = vand.u32 %v313, 4294901760
      %v647 = vsub.f32 %v313, %v646
      %648 = vmatmul.f32.gmra.mxu0 %v647
      %v649 = vpop.f32.mrf.mxu0
      %v650 = vadd.f32 %v554, %v649
      %v651 = vand.u32 %v316, 4294901760
      %v652 = vsub.f32 %v316, %v651
      %653 = vmatmul.f32.gmra.mxu0 %v652
      %v654 = vpop.f32.mrf.mxu0
      %v655 = vadd.f32 %v558, %v654
      %v656 = vand.u32 %v319, 4294901760
      %v657 = vsub.f32 %v319, %v656
      %658 = vmatmul.f32.gmra.mxu0 %v657
      %v659 = vpop.f32.mrf.mxu0
      %v660 = vadd.f32 %v562, %v659
      %v661 = vand.u32 %v322, 4294901760
      %v662 = vsub.f32 %v322, %v661
      %663 = vmatmul.f32.gmra.mxu0 %v662
      %v664 = vpop.f32.mrf.mxu0
      %v665 = vadd.f32 %v566, %v664
      %v666 = vand.u32 %v325, 4294901760
      %v667 = vsub.f32 %v325, %v666
      %668 = vmatmul.f32.gmra.mxu0 %v667
      %v669 = vpop.f32.mrf.mxu0
      %v670 = vadd.f32 %v570, %v669
      %v671 = vand.u32 %v328, 4294901760
      %v672 = vsub.f32 %v328, %v671
      %673 = vmatmul.f32.gmra.mxu0 %v672
      %v674 = vpop.f32.mrf.mxu0
      %v675 = vadd.f32 %v574, %v674
      %v676 = vand.u32 %v331, 4294901760
      %v677 = vsub.f32 %v331, %v676
      %678 = vmatmul.f32.gmra.mxu0 %v677
      %v679 = vpop.f32.mrf.mxu0
      %v680 = vadd.f32 %v578, %v679
      %v681 = vand.u32 %v334, 4294901760
      %v682 = vsub.f32 %v334, %v681
      %683 = vmatmul.f32.gmra.mxu0 %v682
      %v684 = vpop.f32.mrf.mxu0
      %v685 = vadd.f32 %v582, %v684
      %v686 = vand.u32 %v337, 4294901760
      %v687 = vsub.f32 %v337, %v686
      %688 = vmatmul.f32.gmra.mxu0 %v687
      %v689 = vpop.f32.mrf.mxu0
      %v690 = vadd.f32 %v586, %v689
      %v691 = vand.u32 %v340, 4294901760
      %v692 = vsub.f32 %v340, %v691
      %693 = vmatmul.f32.gmra.mxu0 %v692
      %v694 = vpop.f32.mrf.mxu0
      %v695 = vadd.f32 %v590, %v694
      %696 = vdwg.mxu0
      %697 = vmatpush.msra.mxu0 0.0
      %698 = vmatpush.msra.mxu0 0.0
      %699 = vmatpush.msra.mxu0 0.0
      %700 = vmatpush.msra.mxu0 0.0
      %701 = vmatpush.msra.mxu0 0.0
      %702 = vmatpush.msra.mxu0 0.0
      %703 = vmatpush.msra.mxu0 0.0
      %704 = vmatpush.msra.mxu0 0.0
      %705 = vmatpush.msra.mxu0 0.0
      %706 = vmatpush.msra.mxu0 0.0
      %707 = vmatpush.msra.mxu0 0.0
      %708 = vmatpush.msra.mxu0 0.0
      %v709 = vand.u32 %v288, 4294901760
      %710 = vmatpush.msra.mxu0 %v709
      %v711 = vand.u32 %v287, 4294901760
      %712 = vmatpush.msra.mxu0 %v711
      %v713 = vand.u32 %v286, 4294901760
      %714 = vmatpush.msra.mxu0 %v713
      %v715 = vand.u32 %v285, 4294901760
      %716 = vmatpush.msra.mxu0 %v715
      %v717 = vand.u32 %v295, 4294901760
      %v718 = vsub.f32 %v295, %v717
      %v719 = vand.u32 %v718, 4294901760
      %720 = vmatmul.f32.gmra.mxu0 %v719
      %v721 = vpop.f32.mrf.mxu0
      %v722 = vadd.f32 %v620, %v721
      %v723 = vand.u32 %v298, 4294901760
      %v724 = vsub.f32 %v298, %v723
      %v725 = vand.u32 %v724, 4294901760
      %726 = vmatmul.f32.gmra.mxu0 %v725
      %v727 = vpop.f32.mrf.mxu0
      %v728 = vadd.f32 %v625, %v727
      %v729 = vand.u32 %v301, 4294901760
      %v730 = vsub.f32 %v301, %v729
      %v731 = vand.u32 %v730, 4294901760
      %732 = vmatmul.f32.gmra.mxu0 %v731
      %v733 = vpop.f32.mrf.mxu0
      %v734 = vadd.f32 %v630, %v733
      %v735 = vand.u32 %v304, 4294901760
      %v736 = vsub.f32 %v304, %v735
      %v737 = vand.u32 %v736, 4294901760
      %738 = vmatmul.f32.gmra.mxu0 %v737
      %v739 = vpop.f32.mrf.mxu0
      %v740 = vadd.f32 %v635, %v739
      %v741 = vand.u32 %v307, 4294901760
      %v742 = vsub.f32 %v307, %v741
      %v743 = vand.u32 %v742, 4294901760
      %744 = vmatmul.f32.gmra.mxu0 %v743
      %v745 = vpop.f32.mrf.mxu0
      %v746 = vadd.f32 %v640, %v745
      %v747 = vand.u32 %v310, 4294901760
      %v748 = vsub.f32 %v310, %v747
      %v749 = vand.u32 %v748, 4294901760
      %750 = vmatmul.f32.gmra.mxu0 %v749
      %v751 = vpop.f32.mrf.mxu0
      %v752 = vadd.f32 %v645, %v751
      %v753 = vand.u32 %v313, 4294901760
      %v754 = vsub.f32 %v313, %v753
      %v755 = vand.u32 %v754, 4294901760
      %756 = vmatmul.f32.gmra.mxu0 %v755
      %v757 = vpop.f32.mrf.mxu0
      %v758 = vadd.f32 %v650, %v757
      %v759 = vand.u32 %v316, 4294901760
      %v760 = vsub.f32 %v316, %v759
      %v761 = vand.u32 %v760, 4294901760
      %762 = vmatmul.f32.gmra.mxu0 %v761
      %v763 = vpop.f32.mrf.mxu0
      %v764 = vadd.f32 %v655, %v763
      %v765 = vand.u32 %v319, 4294901760
      %v766 = vsub.f32 %v319, %v765
      %v767 = vand.u32 %v766, 4294901760
      %768 = vmatmul.f32.gmra.mxu0 %v767
      %v769 = vpop.f32.mrf.mxu0
      %v770 = vadd.f32 %v660, %v769
      %v771 = vand.u32 %v322, 4294901760
      %v772 = vsub.f32 %v322, %v771
      %v773 = vand.u32 %v772, 4294901760
      %774 = vmatmul.f32.gmra.mxu0 %v773
      %v775 = vpop.f32.mrf.mxu0
      %v776 = vadd.f32 %v665, %v775
      %v777 = vand.u32 %v325, 4294901760
      %v778 = vsub.f32 %v325, %v777
      %v779 = vand.u32 %v778, 4294901760
      %780 = vmatmul.f32.gmra.mxu0 %v779
      %v781 = vpop.f32.mrf.mxu0
      %v782 = vadd.f32 %v670, %v781
      %v783 = vand.u32 %v328, 4294901760
      %v784 = vsub.f32 %v328, %v783
      %v785 = vand.u32 %v784, 4294901760
      %786 = vmatmul.f32.gmra.mxu0 %v785
      %v787 = vpop.f32.mrf.mxu0
      %v788 = vadd.f32 %v675, %v787
      %v789 = vand.u32 %v331, 4294901760
      %v790 = vsub.f32 %v331, %v789
      %v791 = vand.u32 %v790, 4294901760
      %792 = vmatmul.f32.gmra.mxu0 %v791
      %v793 = vpop.f32.mrf.mxu0
      %v794 = vadd.f32 %v680, %v793
      %v795 = vand.u32 %v334, 4294901760
      %v796 = vsub.f32 %v334, %v795
      %v797 = vand.u32 %v796, 4294901760
      %798 = vmatmul.f32.gmra.mxu0 %v797
      %v799 = vpop.f32.mrf.mxu0
      %v800 = vadd.f32 %v685, %v799
      %v801 = vand.u32 %v337, 4294901760
      %v802 = vsub.f32 %v337, %v801
      %v803 = vand.u32 %v802, 4294901760
      %804 = vmatmul.f32.gmra.mxu0 %v803
      %v805 = vpop.f32.mrf.mxu0
      %v806 = vadd.f32 %v690, %v805
      %v807 = vand.u32 %v340, 4294901760
      %v808 = vsub.f32 %v340, %v807
      %v809 = vand.u32 %v808, 4294901760
      %810 = vmatmul.f32.gmra.mxu0 %v809
      %v811 = vpop.f32.mrf.mxu0
      %v812 = vadd.f32 %v695, %v811
      %813 = vdwg.mxu0
      %814 = vmatpush.msra.mxu0 0.0
      %815 = vmatpush.msra.mxu0 0.0
      %816 = vmatpush.msra.mxu0 0.0
      %817 = vmatpush.msra.mxu0 0.0
      %818 = vmatpush.msra.mxu0 0.0
      %819 = vmatpush.msra.mxu0 0.0
      %820 = vmatpush.msra.mxu0 0.0
      %821 = vmatpush.msra.mxu0 0.0
      %822 = vmatpush.msra.mxu0 0.0
      %823 = vmatpush.msra.mxu0 0.0
      %824 = vmatpush.msra.mxu0 0.0
      %825 = vmatpush.msra.mxu0 0.0
      %v826 = vand.u32 %v288, 4294901760
      %v827 = vsub.f32 %v288, %v826
      %v828 = vand.u32 %v827, 4294901760
      %829 = vmatpush.msra.mxu0 %v828
      %v830 = vand.u32 %v287, 4294901760
      %v831 = vsub.f32 %v287, %v830
      %v832 = vand.u32 %v831, 4294901760
      %833 = vmatpush.msra.mxu0 %v832
      %v834 = vand.u32 %v286, 4294901760
      %v835 = vsub.f32 %v286, %v834
      %v836 = vand.u32 %v835, 4294901760
      %837 = vmatpush.msra.mxu0 %v836
      %v838 = vand.u32 %v285, 4294901760
      %v839 = vsub.f32 %v285, %v838
      %v840 = vand.u32 %v839, 4294901760
      %841 = vmatpush.msra.mxu0 %v840
      %v842 = vand.u32 %v295, 4294901760
      %843 = vmatmul.f32.gmra.mxu0 %v842
      %v844 = vpop.f32.mrf.mxu0
      %v845 = vadd.f32 %v722, %v844
      %v846 = vand.u32 %v298, 4294901760
      %847 = vmatmul.f32.gmra.mxu0 %v846
      %v848 = vpop.f32.mrf.mxu0
      %v849 = vadd.f32 %v728, %v848
      %v850 = vand.u32 %v301, 4294901760
      %851 = vmatmul.f32.gmra.mxu0 %v850
      %v852 = vpop.f32.mrf.mxu0
      %v853 = vadd.f32 %v734, %v852
      %v854 = vand.u32 %v304, 4294901760
      %855 = vmatmul.f32.gmra.mxu0 %v854
      %v856 = vpop.f32.mrf.mxu0
      %v857 = vadd.f32 %v740, %v856
      %v858 = vand.u32 %v307, 4294901760
      %859 = vmatmul.f32.gmra.mxu0 %v858
      %v860 = vpop.f32.mrf.mxu0
      %v861 = vadd.f32 %v746, %v860
      %v862 = vand.u32 %v310, 4294901760
      %863 = vmatmul.f32.gmra.mxu0 %v862
      %v864 = vpop.f32.mrf.mxu0
      %v865 = vadd.f32 %v752, %v864
      %v866 = vand.u32 %v313, 4294901760
      %867 = vmatmul.f32.gmra.mxu0 %v866
      %v868 = vpop.f32.mrf.mxu0
      %v869 = vadd.f32 %v758, %v868
      %v870 = vand.u32 %v316, 4294901760
      %871 = vmatmul.f32.gmra.mxu0 %v870
      %v872 = vpop.f32.mrf.mxu0
      %v873 = vadd.f32 %v764, %v872
      %v874 = vand.u32 %v319, 4294901760
      %875 = vmatmul.f32.gmra.mxu0 %v874
      %v876 = vpop.f32.mrf.mxu0
      %v877 = vadd.f32 %v770, %v876
      %v878 = vand.u32 %v322, 4294901760
      %879 = vmatmul.f32.gmra.mxu0 %v878
      %v880 = vpop.f32.mrf.mxu0
      %v881 = vadd.f32 %v776, %v880
      %v882 = vand.u32 %v325, 4294901760
      %883 = vmatmul.f32.gmra.mxu0 %v882
      %v884 = vpop.f32.mrf.mxu0
      %v885 = vadd.f32 %v782, %v884
      %v886 = vand.u32 %v328, 4294901760
      %887 = vmatmul.f32.gmra.mxu0 %v886
      %v888 = vpop.f32.mrf.mxu0
      %v889 = vadd.f32 %v788, %v888
      %v890 = vand.u32 %v331, 4294901760
      %891 = vmatmul.f32.gmra.mxu0 %v890
      %v892 = vpop.f32.mrf.mxu0
      %v893 = vadd.f32 %v794, %v892
      %v894 = vand.u32 %v334, 4294901760
      %895 = vmatmul.f32.gmra.mxu0 %v894
      %v896 = vpop.f32.mrf.mxu0
      %v897 = vadd.f32 %v800, %v896
      %v898 = vand.u32 %v337, 4294901760
      %899 = vmatmul.f32.gmra.mxu0 %v898
      %v900 = vpop.f32.mrf.mxu0
      %v901 = vadd.f32 %v806, %v900
      %v902 = vand.u32 %v340, 4294901760
      %903 = vmatmul.f32.gmra.mxu0 %v902
      %v904 = vpop.f32.mrf.mxu0
      %v905 = vadd.f32 %v812, %v904
      %906 = vdwg.mxu0
      %907 = vmatpush.msra.mxu0 0.0
      %908 = vmatpush.msra.mxu0 0.0
      %909 = vmatpush.msra.mxu0 0.0
      %910 = vmatpush.msra.mxu0 0.0
      %911 = vmatpush.msra.mxu0 0.0
      %912 = vmatpush.msra.mxu0 0.0
      %913 = vmatpush.msra.mxu0 0.0
      %914 = vmatpush.msra.mxu0 0.0
      %915 = vmatpush.msra.mxu0 0.0
      %916 = vmatpush.msra.mxu0 0.0
      %917 = vmatpush.msra.mxu0 0.0
      %918 = vmatpush.msra.mxu0 0.0
      %v919 = vand.u32 %v288, 4294901760
      %920 = vmatpush.msra.mxu0 %v919
      %v921 = vand.u32 %v287, 4294901760
      %922 = vmatpush.msra.mxu0 %v921
      %v923 = vand.u32 %v286, 4294901760
      %924 = vmatpush.msra.mxu0 %v923
      %v925 = vand.u32 %v285, 4294901760
      %926 = vmatpush.msra.mxu0 %v925
      %v927 = vand.u32 %v295, 4294901760
      %928 = vmatmul.f32.gmra.mxu0 %v927
      %v929 = vpop.f32.mrf.mxu0
      %v930 = vadd.f32 %v845, %v929
      %v931 = vand.u32 %v298, 4294901760
      %932 = vmatmul.f32.gmra.mxu0 %v931
      %v933 = vpop.f32.mrf.mxu0
      %v934 = vadd.f32 %v849, %v933
      %v935 = vand.u32 %v301, 4294901760
      %936 = vmatmul.f32.gmra.mxu0 %v935
      %v937 = vpop.f32.mrf.mxu0
      %v938 = vadd.f32 %v853, %v937
      %v939 = vand.u32 %v304, 4294901760
      %940 = vmatmul.f32.gmra.mxu0 %v939
      %v941 = vpop.f32.mrf.mxu0
      %v942 = vadd.f32 %v857, %v941
      %v943 = vand.u32 %v307, 4294901760
      %944 = vmatmul.f32.gmra.mxu0 %v943
      %v945 = vpop.f32.mrf.mxu0
      %v946 = vadd.f32 %v861, %v945
      %v947 = vand.u32 %v310, 4294901760
      %948 = vmatmul.f32.gmra.mxu0 %v947
      %v949 = vpop.f32.mrf.mxu0
      %v950 = vadd.f32 %v865, %v949
      %v951 = vand.u32 %v313, 4294901760
      %952 = vmatmul.f32.gmra.mxu0 %v951
      %v953 = vpop.f32.mrf.mxu0
      %v954 = vadd.f32 %v869, %v953
      %v955 = vand.u32 %v316, 4294901760
      %956 = vmatmul.f32.gmra.mxu0 %v955
      %v957 = vpop.f32.mrf.mxu0
      %v958 = vadd.f32 %v873, %v957
      %v959 = vand.u32 %v319, 4294901760
      %960 = vmatmul.f32.gmra.mxu0 %v959
      %v961 = vpop.f32.mrf.mxu0
      %v962 = vadd.f32 %v877, %v961
      %v963 = vand.u32 %v322, 4294901760
      %964 = vmatmul.f32.gmra.mxu0 %v963
      %v965 = vpop.f32.mrf.mxu0
      %v966 = vadd.f32 %v881, %v965
      %v967 = vand.u32 %v325, 4294901760
      %968 = vmatmul.f32.gmra.mxu0 %v967
      %v969 = vpop.f32.mrf.mxu0
      %v970 = vadd.f32 %v885, %v969
      %v971 = vand.u32 %v328, 4294901760
      %972 = vmatmul.f32.gmra.mxu0 %v971
      %v973 = vpop.f32.mrf.mxu0
      %v974 = vadd.f32 %v889, %v973
      %v975 = vand.u32 %v331, 4294901760
      %976 = vmatmul.f32.gmra.mxu0 %v975
      %v977 = vpop.f32.mrf.mxu0
      %v978 = vadd.f32 %v893, %v977
      %v979 = vand.u32 %v334, 4294901760
      %980 = vmatmul.f32.gmra.mxu0 %v979
      %v981 = vpop.f32.mrf.mxu0
      %v982 = vadd.f32 %v897, %v981
      %v983 = vand.u32 %v337, 4294901760
      %984 = vmatmul.f32.gmra.mxu0 %v983
      %v985 = vpop.f32.mrf.mxu0
      %v986 = vadd.f32 %v901, %v985
      %v987 = vand.u32 %v340, 4294901760
      %988 = vmatmul.f32.gmra.mxu0 %v987
      %v989 = vpop.f32.mrf.mxu0
      %v990 = vadd.f32 %v905, %v989
      %991 = vdwg.mxu0
      %v992 = vmax.f32 %v930, 0.0
      %v993 = vmax.f32 %v934, 0.0
      %v994 = vmax.f32 %v938, 0.0
      %v995 = vmax.f32 %v942, 0.0
      %v996 = vmax.f32 %v946, 0.0
      %v997 = vmax.f32 %v950, 0.0
      %v998 = vmax.f32 %v954, 0.0
      %v999 = vmax.f32 %v958, 0.0
      %v1000 = vmax.f32 %v962, 0.0
      %v1001 = vmax.f32 %v966, 0.0
      %v1002 = vmax.f32 %v970, 0.0
      %v1003 = vmax.f32 %v974, 0.0
      %v1004 = vmax.f32 %v978, 0.0
      %v1005 = vmax.f32 %v982, 0.0
      %v1006 = vmax.f32 %v986, 0.0
      %v1007 = vmax.f32 %v990, 0.0
      %v1008 = vld [vmem:[%s3] sm:$0xff]
      %v1009 = vld [vmem:[%s3 + $0x8] sm:$0xff]
      %v1010 = vld [vmem:[%s3 + $0x10] sm:$0xff]
      %v1011 = vld [vmem:[%s3 + $0x18] sm:$0xff]
      %v1013 = vsel %vm293, %v992, 0
      %v1016 = vsel %vm293, %v993, 0
      %v1019 = vsel %vm293, %v994, 0
      %v1022 = vsel %vm293, %v995, 0
      %v1025 = vsel %vm293, %v996, 0
      %v1028 = vsel %vm293, %v997, 0
      %v1031 = vsel %vm293, %v998, 0
      %v1034 = vsel %vm293, %v999, 0
      %v1037 = vsel %vm293, %v1000, 0
      %v1040 = vsel %vm293, %v1001, 0
      %v1043 = vsel %vm293, %v1002, 0
      %v1046 = vsel %vm293, %v1003, 0
      %v1049 = vsel %vm293, %v1004, 0
      %v1052 = vsel %vm293, %v1005, 0
      %v1055 = vsel %vm293, %v1006, 0
      %v1058 = vsel %vm293, %v1007, 0
      %1060 = vmatpush.msra.mxu0 0.0
      %1061 = vmatpush.msra.mxu0 0.0
      %1062 = vmatpush.msra.mxu0 0.0
      %1063 = vmatpush.msra.mxu0 0.0
      %1064 = vmatpush.msra.mxu0 0.0
      %1065 = vmatpush.msra.mxu0 0.0
      %1066 = vmatpush.msra.mxu0 0.0
      %1067 = vmatpush.msra.mxu0 0.0
      %1068 = vmatpush.msra.mxu0 0.0
      %1069 = vmatpush.msra.mxu0 0.0
      %1070 = vmatpush.msra.mxu0 0.0
      %1071 = vmatpush.msra.mxu0 0.0
      %v1072 = vand.u32 %v1011, 4294901760
      %1073 = vmatpush.msra.mxu0 %v1072
      %v1074 = vand.u32 %v1010, 4294901760
      %1075 = vmatpush.msra.mxu0 %v1074
      %v1076 = vand.u32 %v1009, 4294901760
      %1077 = vmatpush.msra.mxu0 %v1076
      %v1078 = vand.u32 %v1008, 4294901760
      %1079 = vmatpush.msra.mxu0 %v1078
      %v1080 = vand.u32 %v1013, 4294901760
      %v1081 = vsub.f32 %v1013, %v1080
      %v1082 = vand.u32 %v1081, 4294901760
      %v1083 = vsub.f32 %v1081, %v1082
      %v1084 = vand.u32 %v1083, 4294901760
      %1085 = vmatmul.f32.gmra.mxu0 %v1084
      %v1086 = vpop.f32.mrf.mxu0
      %v1087 = vadd.f32 0.0, %v1086
      %v1088 = vand.u32 %v1016, 4294901760
      %v1089 = vsub.f32 %v1016, %v1088
      %v1090 = vand.u32 %v1089, 4294901760
      %v1091 = vsub.f32 %v1089, %v1090
      %v1092 = vand.u32 %v1091, 4294901760
      %1093 = vmatmul.f32.gmra.mxu0 %v1092
      %v1094 = vpop.f32.mrf.mxu0
      %v1095 = vadd.f32 0.0, %v1094
      %v1096 = vand.u32 %v1019, 4294901760
      %v1097 = vsub.f32 %v1019, %v1096
      %v1098 = vand.u32 %v1097, 4294901760
      %v1099 = vsub.f32 %v1097, %v1098
      %v1100 = vand.u32 %v1099, 4294901760
      %1101 = vmatmul.f32.gmra.mxu0 %v1100
      %v1102 = vpop.f32.mrf.mxu0
      %v1103 = vadd.f32 0.0, %v1102
      %v1104 = vand.u32 %v1022, 4294901760
      %v1105 = vsub.f32 %v1022, %v1104
      %v1106 = vand.u32 %v1105, 4294901760
      %v1107 = vsub.f32 %v1105, %v1106
      %v1108 = vand.u32 %v1107, 4294901760
      %1109 = vmatmul.f32.gmra.mxu0 %v1108
      %v1110 = vpop.f32.mrf.mxu0
      %v1111 = vadd.f32 0.0, %v1110
      %v1112 = vand.u32 %v1025, 4294901760
      %v1113 = vsub.f32 %v1025, %v1112
      %v1114 = vand.u32 %v1113, 4294901760
      %v1115 = vsub.f32 %v1113, %v1114
      %v1116 = vand.u32 %v1115, 4294901760
      %1117 = vmatmul.f32.gmra.mxu0 %v1116
      %v1118 = vpop.f32.mrf.mxu0
      %v1119 = vadd.f32 0.0, %v1118
      %v1120 = vand.u32 %v1028, 4294901760
      %v1121 = vsub.f32 %v1028, %v1120
      %v1122 = vand.u32 %v1121, 4294901760
      %v1123 = vsub.f32 %v1121, %v1122
      %v1124 = vand.u32 %v1123, 4294901760
      %1125 = vmatmul.f32.gmra.mxu0 %v1124
      %v1126 = vpop.f32.mrf.mxu0
      %v1127 = vadd.f32 0.0, %v1126
      %v1128 = vand.u32 %v1031, 4294901760
      %v1129 = vsub.f32 %v1031, %v1128
      %v1130 = vand.u32 %v1129, 4294901760
      %v1131 = vsub.f32 %v1129, %v1130
      %v1132 = vand.u32 %v1131, 4294901760
      %1133 = vmatmul.f32.gmra.mxu0 %v1132
      %v1134 = vpop.f32.mrf.mxu0
      %v1135 = vadd.f32 0.0, %v1134
      %v1136 = vand.u32 %v1034, 4294901760
      %v1137 = vsub.f32 %v1034, %v1136
      %v1138 = vand.u32 %v1137, 4294901760
      %v1139 = vsub.f32 %v1137, %v1138
      %v1140 = vand.u32 %v1139, 4294901760
      %1141 = vmatmul.f32.gmra.mxu0 %v1140
      %v1142 = vpop.f32.mrf.mxu0
      %v1143 = vadd.f32 0.0, %v1142
      %v1144 = vand.u32 %v1037, 4294901760
      %v1145 = vsub.f32 %v1037, %v1144
      %v1146 = vand.u32 %v1145, 4294901760
      %v1147 = vsub.f32 %v1145, %v1146
      %v1148 = vand.u32 %v1147, 4294901760
      %1149 = vmatmul.f32.gmra.mxu0 %v1148
      %v1150 = vpop.f32.mrf.mxu0
      %v1151 = vadd.f32 0.0, %v1150
      %v1152 = vand.u32 %v1040, 4294901760
      %v1153 = vsub.f32 %v1040, %v1152
      %v1154 = vand.u32 %v1153, 4294901760
      %v1155 = vsub.f32 %v1153, %v1154
      %v1156 = vand.u32 %v1155, 4294901760
      %1157 = vmatmul.f32.gmra.mxu0 %v1156
      %v1158 = vpop.f32.mrf.mxu0
      %v1159 = vadd.f32 0.0, %v1158
      %v1160 = vand.u32 %v1043, 4294901760
      %v1161 = vsub.f32 %v1043, %v1160
      %v1162 = vand.u32 %v1161, 4294901760
      %v1163 = vsub.f32 %v1161, %v1162
      %v1164 = vand.u32 %v1163, 4294901760
      %1165 = vmatmul.f32.gmra.mxu0 %v1164
      %v1166 = vpop.f32.mrf.mxu0
      %v1167 = vadd.f32 0.0, %v1166
      %v1168 = vand.u32 %v1046, 4294901760
      %v1169 = vsub.f32 %v1046, %v1168
      %v1170 = vand.u32 %v1169, 4294901760
      %v1171 = vsub.f32 %v1169, %v1170
      %v1172 = vand.u32 %v1171, 4294901760
      %1173 = vmatmul.f32.gmra.mxu0 %v1172
      %v1174 = vpop.f32.mrf.mxu0
      %v1175 = vadd.f32 0.0, %v1174
      %v1176 = vand.u32 %v1049, 4294901760
      %v1177 = vsub.f32 %v1049, %v1176
      %v1178 = vand.u32 %v1177, 4294901760
      %v1179 = vsub.f32 %v1177, %v1178
      %v1180 = vand.u32 %v1179, 4294901760
      %1181 = vmatmul.f32.gmra.mxu0 %v1180
      %v1182 = vpop.f32.mrf.mxu0
      %v1183 = vadd.f32 0.0, %v1182
      %v1184 = vand.u32 %v1052, 4294901760
      %v1185 = vsub.f32 %v1052, %v1184
      %v1186 = vand.u32 %v1185, 4294901760
      %v1187 = vsub.f32 %v1185, %v1186
      %v1188 = vand.u32 %v1187, 4294901760
      %1189 = vmatmul.f32.gmra.mxu0 %v1188
      %v1190 = vpop.f32.mrf.mxu0
      %v1191 = vadd.f32 0.0, %v1190
      %v1192 = vand.u32 %v1055, 4294901760
      %v1193 = vsub.f32 %v1055, %v1192
      %v1194 = vand.u32 %v1193, 4294901760
      %v1195 = vsub.f32 %v1193, %v1194
      %v1196 = vand.u32 %v1195, 4294901760
      %1197 = vmatmul.f32.gmra.mxu0 %v1196
      %v1198 = vpop.f32.mrf.mxu0
      %v1199 = vadd.f32 0.0, %v1198
      %v1200 = vand.u32 %v1058, 4294901760
      %v1201 = vsub.f32 %v1058, %v1200
      %v1202 = vand.u32 %v1201, 4294901760
      %v1203 = vsub.f32 %v1201, %v1202
      %v1204 = vand.u32 %v1203, 4294901760
      %1205 = vmatmul.f32.gmra.mxu0 %v1204
      %v1206 = vpop.f32.mrf.mxu0
      %v1207 = vadd.f32 0.0, %v1206
      %1208 = vdwg.mxu0
      %1209 = vmatpush.msra.mxu0 0.0
      %1210 = vmatpush.msra.mxu0 0.0
      %1211 = vmatpush.msra.mxu0 0.0
      %1212 = vmatpush.msra.mxu0 0.0
      %1213 = vmatpush.msra.mxu0 0.0
      %1214 = vmatpush.msra.mxu0 0.0
      %1215 = vmatpush.msra.mxu0 0.0
      %1216 = vmatpush.msra.mxu0 0.0
      %1217 = vmatpush.msra.mxu0 0.0
      %1218 = vmatpush.msra.mxu0 0.0
      %1219 = vmatpush.msra.mxu0 0.0
      %1220 = vmatpush.msra.mxu0 0.0
      %v1221 = vand.u32 %v1011, 4294901760
      %v1222 = vsub.f32 %v1011, %v1221
      %v1223 = vand.u32 %v1222, 4294901760
      %v1224 = vsub.f32 %v1222, %v1223
      %v1225 = vand.u32 %v1224, 4294901760
      %1226 = vmatpush.msra.mxu0 %v1225
      %v1227 = vand.u32 %v1010, 4294901760
      %v1228 = vsub.f32 %v1010, %v1227
      %v1229 = vand.u32 %v1228, 4294901760
      %v1230 = vsub.f32 %v1228, %v1229
      %v1231 = vand.u32 %v1230, 4294901760
      %1232 = vmatpush.msra.mxu0 %v1231
      %v1233 = vand.u32 %v1009, 4294901760
      %v1234 = vsub.f32 %v1009, %v1233
      %v1235 = vand.u32 %v1234, 4294901760
      %v1236 = vsub.f32 %v1234, %v1235
      %v1237 = vand.u32 %v1236, 4294901760
      %1238 = vmatpush.msra.mxu0 %v1237
      %v1239 = vand.u32 %v1008, 4294901760
      %v1240 = vsub.f32 %v1008, %v1239
      %v1241 = vand.u32 %v1240, 4294901760
      %v1242 = vsub.f32 %v1240, %v1241
      %v1243 = vand.u32 %v1242, 4294901760
      %1244 = vmatpush.msra.mxu0 %v1243
      %v1245 = vand.u32 %v1013, 4294901760
      %1246 = vmatmul.f32.gmra.mxu0 %v1245
      %v1247 = vpop.f32.mrf.mxu0
      %v1248 = vadd.f32 %v1087, %v1247
      %v1249 = vand.u32 %v1016, 4294901760
      %1250 = vmatmul.f32.gmra.mxu0 %v1249
      %v1251 = vpop.f32.mrf.mxu0
      %v1252 = vadd.f32 %v1095, %v1251
      %v1253 = vand.u32 %v1019, 4294901760
      %1254 = vmatmul.f32.gmra.mxu0 %v1253
      %v1255 = vpop.f32.mrf.mxu0
      %v1256 = vadd.f32 %v1103, %v1255
      %v1257 = vand.u32 %v1022, 4294901760
      %1258 = vmatmul.f32.gmra.mxu0 %v1257
      %v1259 = vpop.f32.mrf.mxu0
      %v1260 = vadd.f32 %v1111, %v1259
      %v1261 = vand.u32 %v1025, 4294901760
      %1262 = vmatmul.f32.gmra.mxu0 %v1261
      %v1263 = vpop.f32.mrf.mxu0
      %v1264 = vadd.f32 %v1119, %v1263
      %v1265 = vand.u32 %v1028, 4294901760
      %1266 = vmatmul.f32.gmra.mxu0 %v1265
      %v1267 = vpop.f32.mrf.mxu0
      %v1268 = vadd.f32 %v1127, %v1267
      %v1269 = vand.u32 %v1031, 4294901760
      %1270 = vmatmul.f32.gmra.mxu0 %v1269
      %v1271 = vpop.f32.mrf.mxu0
      %v1272 = vadd.f32 %v1135, %v1271
      %v1273 = vand.u32 %v1034, 4294901760
      %1274 = vmatmul.f32.gmra.mxu0 %v1273
      %v1275 = vpop.f32.mrf.mxu0
      %v1276 = vadd.f32 %v1143, %v1275
      %v1277 = vand.u32 %v1037, 4294901760
      %1278 = vmatmul.f32.gmra.mxu0 %v1277
      %v1279 = vpop.f32.mrf.mxu0
      %v1280 = vadd.f32 %v1151, %v1279
      %v1281 = vand.u32 %v1040, 4294901760
      %1282 = vmatmul.f32.gmra.mxu0 %v1281
      %v1283 = vpop.f32.mrf.mxu0
      %v1284 = vadd.f32 %v1159, %v1283
      %v1285 = vand.u32 %v1043, 4294901760
      %1286 = vmatmul.f32.gmra.mxu0 %v1285
      %v1287 = vpop.f32.mrf.mxu0
      %v1288 = vadd.f32 %v1167, %v1287
      %v1289 = vand.u32 %v1046, 4294901760
      %1290 = vmatmul.f32.gmra.mxu0 %v1289
      %v1291 = vpop.f32.mrf.mxu0
      %v1292 = vadd.f32 %v1175, %v1291
      %v1293 = vand.u32 %v1049, 4294901760
      %1294 = vmatmul.f32.gmra.mxu0 %v1293
      %v1295 = vpop.f32.mrf.mxu0
      %v1296 = vadd.f32 %v1183, %v1295
      %v1297 = vand.u32 %v1052, 4294901760
      %1298 = vmatmul.f32.gmra.mxu0 %v1297
      %v1299 = vpop.f32.mrf.mxu0
      %v1300 = vadd.f32 %v1191, %v1299
      %v1301 = vand.u32 %v1055, 4294901760
      %1302 = vmatmul.f32.gmra.mxu0 %v1301
      %v1303 = vpop.f32.mrf.mxu0
      %v1304 = vadd.f32 %v1199, %v1303
      %v1305 = vand.u32 %v1058, 4294901760
      %1306 = vmatmul.f32.gmra.mxu0 %v1305
      %v1307 = vpop.f32.mrf.mxu0
      %v1308 = vadd.f32 %v1207, %v1307
      %1309 = vdwg.mxu0
      %1310 = vmatpush.msra.mxu0 0.0
      %1311 = vmatpush.msra.mxu0 0.0
      %1312 = vmatpush.msra.mxu0 0.0
      %1313 = vmatpush.msra.mxu0 0.0
      %1314 = vmatpush.msra.mxu0 0.0
      %1315 = vmatpush.msra.mxu0 0.0
      %1316 = vmatpush.msra.mxu0 0.0
      %1317 = vmatpush.msra.mxu0 0.0
      %1318 = vmatpush.msra.mxu0 0.0
      %1319 = vmatpush.msra.mxu0 0.0
      %1320 = vmatpush.msra.mxu0 0.0
      %1321 = vmatpush.msra.mxu0 0.0
      %v1322 = vand.u32 %v1011, 4294901760
      %v1323 = vsub.f32 %v1011, %v1322
      %1324 = vmatpush.msra.mxu0 %v1323
      %v1325 = vand.u32 %v1010, 4294901760
      %v1326 = vsub.f32 %v1010, %v1325
      %1327 = vmatpush.msra.mxu0 %v1326
      %v1328 = vand.u32 %v1009, 4294901760
      %v1329 = vsub.f32 %v1009, %v1328
      %1330 = vmatpush.msra.mxu0 %v1329
      %v1331 = vand.u32 %v1008, 4294901760
      %v1332 = vsub.f32 %v1008, %v1331
      %1333 = vmatpush.msra.mxu0 %v1332
      %v1334 = vand.u32 %v1013, 4294901760
      %v1335 = vsub.f32 %v1013, %v1334
      %1336 = vmatmul.f32.gmra.mxu0 %v1335
      %v1337 = vpop.f32.mrf.mxu0
      %v1338 = vadd.f32 %v1248, %v1337
      %v1339 = vand.u32 %v1016, 4294901760
      %v1340 = vsub.f32 %v1016, %v1339
      %1341 = vmatmul.f32.gmra.mxu0 %v1340
      %v1342 = vpop.f32.mrf.mxu0
      %v1343 = vadd.f32 %v1252, %v1342
      %v1344 = vand.u32 %v1019, 4294901760
      %v1345 = vsub.f32 %v1019, %v1344
      %1346 = vmatmul.f32.gmra.mxu0 %v1345
      %v1347 = vpop.f32.mrf.mxu0
      %v1348 = vadd.f32 %v1256, %v1347
      %v1349 = vand.u32 %v1022, 4294901760
      %v1350 = vsub.f32 %v1022, %v1349
      %1351 = vmatmul.f32.gmra.mxu0 %v1350
      %v1352 = vpop.f32.mrf.mxu0
      %v1353 = vadd.f32 %v1260, %v1352
      %v1354 = vand.u32 %v1025, 4294901760
      %v1355 = vsub.f32 %v1025, %v1354
      %1356 = vmatmul.f32.gmra.mxu0 %v1355
      %v1357 = vpop.f32.mrf.mxu0
      %v1358 = vadd.f32 %v1264, %v1357
      %v1359 = vand.u32 %v1028, 4294901760
      %v1360 = vsub.f32 %v1028, %v1359
      %1361 = vmatmul.f32.gmra.mxu0 %v1360
      %v1362 = vpop.f32.mrf.mxu0
      %v1363 = vadd.f32 %v1268, %v1362
      %v1364 = vand.u32 %v1031, 4294901760
      %v1365 = vsub.f32 %v1031, %v1364
      %1366 = vmatmul.f32.gmra.mxu0 %v1365
      %v1367 = vpop.f32.mrf.mxu0
      %v1368 = vadd.f32 %v1272, %v1367
      %v1369 = vand.u32 %v1034, 4294901760
      %v1370 = vsub.f32 %v1034, %v1369
      %1371 = vmatmul.f32.gmra.mxu0 %v1370
      %v1372 = vpop.f32.mrf.mxu0
      %v1373 = vadd.f32 %v1276, %v1372
      %v1374 = vand.u32 %v1037, 4294901760
      %v1375 = vsub.f32 %v1037, %v1374
      %1376 = vmatmul.f32.gmra.mxu0 %v1375
      %v1377 = vpop.f32.mrf.mxu0
      %v1378 = vadd.f32 %v1280, %v1377
      %v1379 = vand.u32 %v1040, 4294901760
      %v1380 = vsub.f32 %v1040, %v1379
      %1381 = vmatmul.f32.gmra.mxu0 %v1380
      %v1382 = vpop.f32.mrf.mxu0
      %v1383 = vadd.f32 %v1284, %v1382
      %v1384 = vand.u32 %v1043, 4294901760
      %v1385 = vsub.f32 %v1043, %v1384
      %1386 = vmatmul.f32.gmra.mxu0 %v1385
      %v1387 = vpop.f32.mrf.mxu0
      %v1388 = vadd.f32 %v1288, %v1387
      %v1389 = vand.u32 %v1046, 4294901760
      %v1390 = vsub.f32 %v1046, %v1389
      %1391 = vmatmul.f32.gmra.mxu0 %v1390
      %v1392 = vpop.f32.mrf.mxu0
      %v1393 = vadd.f32 %v1292, %v1392
      %v1394 = vand.u32 %v1049, 4294901760
      %v1395 = vsub.f32 %v1049, %v1394
      %1396 = vmatmul.f32.gmra.mxu0 %v1395
      %v1397 = vpop.f32.mrf.mxu0
      %v1398 = vadd.f32 %v1296, %v1397
      %v1399 = vand.u32 %v1052, 4294901760
      %v1400 = vsub.f32 %v1052, %v1399
      %1401 = vmatmul.f32.gmra.mxu0 %v1400
      %v1402 = vpop.f32.mrf.mxu0
      %v1403 = vadd.f32 %v1300, %v1402
      %v1404 = vand.u32 %v1055, 4294901760
      %v1405 = vsub.f32 %v1055, %v1404
      %1406 = vmatmul.f32.gmra.mxu0 %v1405
      %v1407 = vpop.f32.mrf.mxu0
      %v1408 = vadd.f32 %v1304, %v1407
      %v1409 = vand.u32 %v1058, 4294901760
      %v1410 = vsub.f32 %v1058, %v1409
      %1411 = vmatmul.f32.gmra.mxu0 %v1410
      %v1412 = vpop.f32.mrf.mxu0
      %v1413 = vadd.f32 %v1308, %v1412
      %1414 = vdwg.mxu0
      %1415 = vmatpush.msra.mxu0 0.0
      %1416 = vmatpush.msra.mxu0 0.0
      %1417 = vmatpush.msra.mxu0 0.0
      %1418 = vmatpush.msra.mxu0 0.0
      %1419 = vmatpush.msra.mxu0 0.0
      %1420 = vmatpush.msra.mxu0 0.0
      %1421 = vmatpush.msra.mxu0 0.0
      %1422 = vmatpush.msra.mxu0 0.0
      %1423 = vmatpush.msra.mxu0 0.0
      %1424 = vmatpush.msra.mxu0 0.0
      %1425 = vmatpush.msra.mxu0 0.0
      %1426 = vmatpush.msra.mxu0 0.0
      %v1427 = vand.u32 %v1011, 4294901760
      %1428 = vmatpush.msra.mxu0 %v1427
      %v1429 = vand.u32 %v1010, 4294901760
      %1430 = vmatpush.msra.mxu0 %v1429
      %v1431 = vand.u32 %v1009, 4294901760
      %1432 = vmatpush.msra.mxu0 %v1431
      %v1433 = vand.u32 %v1008, 4294901760
      %1434 = vmatpush.msra.mxu0 %v1433
      %v1435 = vand.u32 %v1013, 4294901760
      %v1436 = vsub.f32 %v1013, %v1435
      %v1437 = vand.u32 %v1436, 4294901760
      %1438 = vmatmul.f32.gmra.mxu0 %v1437
      %v1439 = vpop.f32.mrf.mxu0
      %v1440 = vadd.f32 %v1338, %v1439
      %v1441 = vand.u32 %v1016, 4294901760
      %v1442 = vsub.f32 %v1016, %v1441
      %v1443 = vand.u32 %v1442, 4294901760
      %1444 = vmatmul.f32.gmra.mxu0 %v1443
      %v1445 = vpop.f32.mrf.mxu0
      %v1446 = vadd.f32 %v1343, %v1445
      %v1447 = vand.u32 %v1019, 4294901760
      %v1448 = vsub.f32 %v1019, %v1447
      %v1449 = vand.u32 %v1448, 4294901760
      %1450 = vmatmul.f32.gmra.mxu0 %v1449
      %v1451 = vpop.f32.mrf.mxu0
      %v1452 = vadd.f32 %v1348, %v1451
      %v1453 = vand.u32 %v1022, 4294901760
      %v1454 = vsub.f32 %v1022, %v1453
      %v1455 = vand.u32 %v1454, 4294901760
      %1456 = vmatmul.f32.gmra.mxu0 %v1455
      %v1457 = vpop.f32.mrf.mxu0
      %v1458 = vadd.f32 %v1353, %v1457
      %v1459 = vand.u32 %v1025, 4294901760
      %v1460 = vsub.f32 %v1025, %v1459
      %v1461 = vand.u32 %v1460, 4294901760
      %1462 = vmatmul.f32.gmra.mxu0 %v1461
      %v1463 = vpop.f32.mrf.mxu0
      %v1464 = vadd.f32 %v1358, %v1463
      %v1465 = vand.u32 %v1028, 4294901760
      %v1466 = vsub.f32 %v1028, %v1465
      %v1467 = vand.u32 %v1466, 4294901760
      %1468 = vmatmul.f32.gmra.mxu0 %v1467
      %v1469 = vpop.f32.mrf.mxu0
      %v1470 = vadd.f32 %v1363, %v1469
      %v1471 = vand.u32 %v1031, 4294901760
      %v1472 = vsub.f32 %v1031, %v1471
      %v1473 = vand.u32 %v1472, 4294901760
      %1474 = vmatmul.f32.gmra.mxu0 %v1473
      %v1475 = vpop.f32.mrf.mxu0
      %v1476 = vadd.f32 %v1368, %v1475
      %v1477 = vand.u32 %v1034, 4294901760
      %v1478 = vsub.f32 %v1034, %v1477
      %v1479 = vand.u32 %v1478, 4294901760
      %1480 = vmatmul.f32.gmra.mxu0 %v1479
      %v1481 = vpop.f32.mrf.mxu0
      %v1482 = vadd.f32 %v1373, %v1481
      %v1483 = vand.u32 %v1037, 4294901760
      %v1484 = vsub.f32 %v1037, %v1483
      %v1485 = vand.u32 %v1484, 4294901760
      %1486 = vmatmul.f32.gmra.mxu0 %v1485
      %v1487 = vpop.f32.mrf.mxu0
      %v1488 = vadd.f32 %v1378, %v1487
      %v1489 = vand.u32 %v1040, 4294901760
      %v1490 = vsub.f32 %v1040, %v1489
      %v1491 = vand.u32 %v1490, 4294901760
      %1492 = vmatmul.f32.gmra.mxu0 %v1491
      %v1493 = vpop.f32.mrf.mxu0
      %v1494 = vadd.f32 %v1383, %v1493
      %v1495 = vand.u32 %v1043, 4294901760
      %v1496 = vsub.f32 %v1043, %v1495
      %v1497 = vand.u32 %v1496, 4294901760
      %1498 = vmatmul.f32.gmra.mxu0 %v1497
      %v1499 = vpop.f32.mrf.mxu0
      %v1500 = vadd.f32 %v1388, %v1499
      %v1501 = vand.u32 %v1046, 4294901760
      %v1502 = vsub.f32 %v1046, %v1501
      %v1503 = vand.u32 %v1502, 4294901760
      %1504 = vmatmul.f32.gmra.mxu0 %v1503
      %v1505 = vpop.f32.mrf.mxu0
      %v1506 = vadd.f32 %v1393, %v1505
      %v1507 = vand.u32 %v1049, 4294901760
      %v1508 = vsub.f32 %v1049, %v1507
      %v1509 = vand.u32 %v1508, 4294901760
      %1510 = vmatmul.f32.gmra.mxu0 %v1509
      %v1511 = vpop.f32.mrf.mxu0
      %v1512 = vadd.f32 %v1398, %v1511
      %v1513 = vand.u32 %v1052, 4294901760
      %v1514 = vsub.f32 %v1052, %v1513
      %v1515 = vand.u32 %v1514, 4294901760
      %1516 = vmatmul.f32.gmra.mxu0 %v1515
      %v1517 = vpop.f32.mrf.mxu0
      %v1518 = vadd.f32 %v1403, %v1517
      %v1519 = vand.u32 %v1055, 4294901760
      %v1520 = vsub.f32 %v1055, %v1519
      %v1521 = vand.u32 %v1520, 4294901760
      %1522 = vmatmul.f32.gmra.mxu0 %v1521
      %v1523 = vpop.f32.mrf.mxu0
      %v1524 = vadd.f32 %v1408, %v1523
      %v1525 = vand.u32 %v1058, 4294901760
      %v1526 = vsub.f32 %v1058, %v1525
      %v1527 = vand.u32 %v1526, 4294901760
      %1528 = vmatmul.f32.gmra.mxu0 %v1527
      %v1529 = vpop.f32.mrf.mxu0
      %v1530 = vadd.f32 %v1413, %v1529
      %1531 = vdwg.mxu0
      %1532 = vmatpush.msra.mxu0 0.0
      %1533 = vmatpush.msra.mxu0 0.0
      %1534 = vmatpush.msra.mxu0 0.0
      %1535 = vmatpush.msra.mxu0 0.0
      %1536 = vmatpush.msra.mxu0 0.0
      %1537 = vmatpush.msra.mxu0 0.0
      %1538 = vmatpush.msra.mxu0 0.0
      %1539 = vmatpush.msra.mxu0 0.0
      %1540 = vmatpush.msra.mxu0 0.0
      %1541 = vmatpush.msra.mxu0 0.0
      %1542 = vmatpush.msra.mxu0 0.0
      %1543 = vmatpush.msra.mxu0 0.0
      %v1544 = vand.u32 %v1011, 4294901760
      %v1545 = vsub.f32 %v1011, %v1544
      %v1546 = vand.u32 %v1545, 4294901760
      %1547 = vmatpush.msra.mxu0 %v1546
      %v1548 = vand.u32 %v1010, 4294901760
      %v1549 = vsub.f32 %v1010, %v1548
      %v1550 = vand.u32 %v1549, 4294901760
      %1551 = vmatpush.msra.mxu0 %v1550
      %v1552 = vand.u32 %v1009, 4294901760
      %v1553 = vsub.f32 %v1009, %v1552
      %v1554 = vand.u32 %v1553, 4294901760
      %1555 = vmatpush.msra.mxu0 %v1554
      %v1556 = vand.u32 %v1008, 4294901760
      %v1557 = vsub.f32 %v1008, %v1556
      %v1558 = vand.u32 %v1557, 4294901760
      %1559 = vmatpush.msra.mxu0 %v1558
      %v1560 = vand.u32 %v1013, 4294901760
      %1561 = vmatmul.f32.gmra.mxu0 %v1560
      %v1562 = vpop.f32.mrf.mxu0
      %v1563 = vadd.f32 %v1440, %v1562
      %v1564 = vand.u32 %v1016, 4294901760
      %1565 = vmatmul.f32.gmra.mxu0 %v1564
      %v1566 = vpop.f32.mrf.mxu0
      %v1567 = vadd.f32 %v1446, %v1566
      %v1568 = vand.u32 %v1019, 4294901760
      %1569 = vmatmul.f32.gmra.mxu0 %v1568
      %v1570 = vpop.f32.mrf.mxu0
      %v1571 = vadd.f32 %v1452, %v1570
      %v1572 = vand.u32 %v1022, 4294901760
      %1573 = vmatmul.f32.gmra.mxu0 %v1572
      %v1574 = vpop.f32.mrf.mxu0
      %v1575 = vadd.f32 %v1458, %v1574
      %v1576 = vand.u32 %v1025, 4294901760
      %1577 = vmatmul.f32.gmra.mxu0 %v1576
      %v1578 = vpop.f32.mrf.mxu0
      %v1579 = vadd.f32 %v1464, %v1578
      %v1580 = vand.u32 %v1028, 4294901760
      %1581 = vmatmul.f32.gmra.mxu0 %v1580
      %v1582 = vpop.f32.mrf.mxu0
      %v1583 = vadd.f32 %v1470, %v1582
      %v1584 = vand.u32 %v1031, 4294901760
      %1585 = vmatmul.f32.gmra.mxu0 %v1584
      %v1586 = vpop.f32.mrf.mxu0
      %v1587 = vadd.f32 %v1476, %v1586
      %v1588 = vand.u32 %v1034, 4294901760
      %1589 = vmatmul.f32.gmra.mxu0 %v1588
      %v1590 = vpop.f32.mrf.mxu0
      %v1591 = vadd.f32 %v1482, %v1590
      %v1592 = vand.u32 %v1037, 4294901760
      %1593 = vmatmul.f32.gmra.mxu0 %v1592
      %v1594 = vpop.f32.mrf.mxu0
      %v1595 = vadd.f32 %v1488, %v1594
      %v1596 = vand.u32 %v1040, 4294901760
      %1597 = vmatmul.f32.gmra.mxu0 %v1596
      %v1598 = vpop.f32.mrf.mxu0
      %v1599 = vadd.f32 %v1494, %v1598
      %v1600 = vand.u32 %v1043, 4294901760
      %1601 = vmatmul.f32.gmra.mxu0 %v1600
      %v1602 = vpop.f32.mrf.mxu0
      %v1603 = vadd.f32 %v1500, %v1602
      %v1604 = vand.u32 %v1046, 4294901760
      %1605 = vmatmul.f32.gmra.mxu0 %v1604
      %v1606 = vpop.f32.mrf.mxu0
      %v1607 = vadd.f32 %v1506, %v1606
      %v1608 = vand.u32 %v1049, 4294901760
      %1609 = vmatmul.f32.gmra.mxu0 %v1608
      %v1610 = vpop.f32.mrf.mxu0
      %v1611 = vadd.f32 %v1512, %v1610
      %v1612 = vand.u32 %v1052, 4294901760
      %1613 = vmatmul.f32.gmra.mxu0 %v1612
      %v1614 = vpop.f32.mrf.mxu0
      %v1615 = vadd.f32 %v1518, %v1614
      %v1616 = vand.u32 %v1055, 4294901760
      %1617 = vmatmul.f32.gmra.mxu0 %v1616
      %v1618 = vpop.f32.mrf.mxu0
      %v1619 = vadd.f32 %v1524, %v1618
      %v1620 = vand.u32 %v1058, 4294901760
      %1621 = vmatmul.f32.gmra.mxu0 %v1620
      %v1622 = vpop.f32.mrf.mxu0
      %v1623 = vadd.f32 %v1530, %v1622
      %1624 = vdwg.mxu0
      %1625 = vmatpush.msra.mxu0 0.0
      %1626 = vmatpush.msra.mxu0 0.0
      %1627 = vmatpush.msra.mxu0 0.0
      %1628 = vmatpush.msra.mxu0 0.0
      %1629 = vmatpush.msra.mxu0 0.0
      %1630 = vmatpush.msra.mxu0 0.0
      %1631 = vmatpush.msra.mxu0 0.0
      %1632 = vmatpush.msra.mxu0 0.0
      %1633 = vmatpush.msra.mxu0 0.0
      %1634 = vmatpush.msra.mxu0 0.0
      %1635 = vmatpush.msra.mxu0 0.0
      %1636 = vmatpush.msra.mxu0 0.0
      %v1637 = vand.u32 %v1011, 4294901760
      %1638 = vmatpush.msra.mxu0 %v1637
      %v1639 = vand.u32 %v1010, 4294901760
      %1640 = vmatpush.msra.mxu0 %v1639
      %v1641 = vand.u32 %v1009, 4294901760
      %1642 = vmatpush.msra.mxu0 %v1641
      %v1643 = vand.u32 %v1008, 4294901760
      %1644 = vmatpush.msra.mxu0 %v1643
      %v1645 = vand.u32 %v1013, 4294901760
      %1646 = vmatmul.f32.gmra.mxu0 %v1645
      %v1647 = vpop.f32.mrf.mxu0
      %v1648 = vadd.f32 %v1563, %v1647
      %v1649 = vand.u32 %v1016, 4294901760
      %1650 = vmatmul.f32.gmra.mxu0 %v1649
      %v1651 = vpop.f32.mrf.mxu0
      %v1652 = vadd.f32 %v1567, %v1651
      %v1653 = vand.u32 %v1019, 4294901760
      %1654 = vmatmul.f32.gmra.mxu0 %v1653
      %v1655 = vpop.f32.mrf.mxu0
      %v1656 = vadd.f32 %v1571, %v1655
      %v1657 = vand.u32 %v1022, 4294901760
      %1658 = vmatmul.f32.gmra.mxu0 %v1657
      %v1659 = vpop.f32.mrf.mxu0
      %v1660 = vadd.f32 %v1575, %v1659
      %v1661 = vand.u32 %v1025, 4294901760
      %1662 = vmatmul.f32.gmra.mxu0 %v1661
      %v1663 = vpop.f32.mrf.mxu0
      %v1664 = vadd.f32 %v1579, %v1663
      %v1665 = vand.u32 %v1028, 4294901760
      %1666 = vmatmul.f32.gmra.mxu0 %v1665
      %v1667 = vpop.f32.mrf.mxu0
      %v1668 = vadd.f32 %v1583, %v1667
      %v1669 = vand.u32 %v1031, 4294901760
      %1670 = vmatmul.f32.gmra.mxu0 %v1669
      %v1671 = vpop.f32.mrf.mxu0
      %v1672 = vadd.f32 %v1587, %v1671
      %v1673 = vand.u32 %v1034, 4294901760
      %1674 = vmatmul.f32.gmra.mxu0 %v1673
      %v1675 = vpop.f32.mrf.mxu0
      %v1676 = vadd.f32 %v1591, %v1675
      %v1677 = vand.u32 %v1037, 4294901760
      %1678 = vmatmul.f32.gmra.mxu0 %v1677
      %v1679 = vpop.f32.mrf.mxu0
      %v1680 = vadd.f32 %v1595, %v1679
      %v1681 = vand.u32 %v1040, 4294901760
      %1682 = vmatmul.f32.gmra.mxu0 %v1681
      %v1683 = vpop.f32.mrf.mxu0
      %v1684 = vadd.f32 %v1599, %v1683
      %v1685 = vand.u32 %v1043, 4294901760
      %1686 = vmatmul.f32.gmra.mxu0 %v1685
      %v1687 = vpop.f32.mrf.mxu0
      %v1688 = vadd.f32 %v1603, %v1687
      %v1689 = vand.u32 %v1046, 4294901760
      %1690 = vmatmul.f32.gmra.mxu0 %v1689
      %v1691 = vpop.f32.mrf.mxu0
      %v1692 = vadd.f32 %v1607, %v1691
      %v1693 = vand.u32 %v1049, 4294901760
      %1694 = vmatmul.f32.gmra.mxu0 %v1693
      %v1695 = vpop.f32.mrf.mxu0
      %v1696 = vadd.f32 %v1611, %v1695
      %v1697 = vand.u32 %v1052, 4294901760
      %1698 = vmatmul.f32.gmra.mxu0 %v1697
      %v1699 = vpop.f32.mrf.mxu0
      %v1700 = vadd.f32 %v1615, %v1699
      %v1701 = vand.u32 %v1055, 4294901760
      %1702 = vmatmul.f32.gmra.mxu0 %v1701
      %v1703 = vpop.f32.mrf.mxu0
      %v1704 = vadd.f32 %v1619, %v1703
      %v1705 = vand.u32 %v1058, 4294901760
      %1706 = vmatmul.f32.gmra.mxu0 %v1705
      %v1707 = vpop.f32.mrf.mxu0
      %v1708 = vadd.f32 %v1623, %v1707
      %1709 = vdwg.mxu0
      %v1710 = vpack.c.bf16 %v1648, %v1648
      %v1711 = vpack.c.bf16 %v1652, %v1652
      %v1712 = vpack.c.bf16 %v1656, %v1656
      %v1713 = vpack.c.bf16 %v1660, %v1660
      %v1714 = vpack.c.bf16 %v1664, %v1664
      %v1715 = vpack.c.bf16 %v1668, %v1668
      %v1716 = vpack.c.bf16 %v1672, %v1672
      %v1717 = vpack.c.bf16 %v1676, %v1676
      %v1718 = vpack.c.bf16 %v1680, %v1680
      %v1719 = vpack.c.bf16 %v1684, %v1684
      %v1720 = vpack.c.bf16 %v1688, %v1688
      %v1721 = vpack.c.bf16 %v1692, %v1692
      %v1722 = vpack.c.bf16 %v1696, %v1696
      %v1723 = vpack.c.bf16 %v1700, %v1700
      %v1724 = vpack.c.bf16 %v1704, %v1704
      %v1725 = vpack.c.bf16 %v1708, %v1708
      %vm1726 = vcmask 257024
      %1727 = vst.msk [vmem:[%s261] sm:$0xf] %vm1726, %v1710
      %1728 = vst.msk [vmem:[%s261 + $0x4] sm:$0xf] %vm1726, %v1711
      %1729 = vst.msk [vmem:[%s261 + $0x8] sm:$0xf] %vm1726, %v1712
      %1730 = vst.msk [vmem:[%s261 + $0xc] sm:$0xf] %vm1726, %v1713
      %1731 = vst.msk [vmem:[%s261 + $0x10] sm:$0xf] %vm1726, %v1714
      %1732 = vst.msk [vmem:[%s261 + $0x14] sm:$0xf] %vm1726, %v1715
      %1733 = vst.msk [vmem:[%s261 + $0x18] sm:$0xf] %vm1726, %v1716
      %1734 = vst.msk [vmem:[%s261 + $0x1c] sm:$0xf] %vm1726, %v1717
      %1735 = vst.msk [vmem:[%s261 + $0x20] sm:$0xf] %vm1726, %v1718
      %1736 = vst.msk [vmem:[%s261 + $0x24] sm:$0xf] %vm1726, %v1719
      %1737 = vst.msk [vmem:[%s261 + $0x28] sm:$0xf] %vm1726, %v1720
      %1738 = vst.msk [vmem:[%s261 + $0x2c] sm:$0xf] %vm1726, %v1721
      %1739 = vst.msk [vmem:[%s261 + $0x30] sm:$0xf] %vm1726, %v1722
      %1740 = vst.msk [vmem:[%s261 + $0x34] sm:$0xf] %vm1726, %v1723
      %1741 = vst.msk [vmem:[%s261 + $0x38] sm:$0xf] %vm1726, %v1724
      %1742 = vst.msk [vmem:[%s261 + $0x3c] sm:$0xf] %vm1726, %v1725
      %v1743 = vld [vmem:[%s4] sm:$0x1]
      %v1745 = vperm.slane %v1743, 0
      %1746 = vrot.lane.b32.xlu0 %v1745, 32
      %v1747 = vpop.permute.xlu0 %1746
      %v1749 = vadd.f32 %v1648, %v1747
      %v1750 = vadd.f32 %v1652, %v1747
      %v1751 = vadd.f32 %v1656, %v1747
      %v1752 = vadd.f32 %v1660, %v1747
      %v1753 = vadd.f32 %v1664, %v1747
      %v1754 = vadd.f32 %v1668, %v1747
      %v1755 = vadd.f32 %v1672, %v1747
      %v1756 = vadd.f32 %v1676, %v1747
      %v1757 = vadd.f32 %v1680, %v1747
      %v1758 = vadd.f32 %v1684, %v1747
      %v1759 = vadd.f32 %v1688, %v1747
      %v1760 = vadd.f32 %v1692, %v1747
      %v1761 = vadd.f32 %v1696, %v1747
      %v1762 = vadd.f32 %v1700, %v1747
      %v1763 = vadd.f32 %v1704, %v1747
      %v1764 = vadd.f32 %v1708, %v1747
      %1781 = vrot.lane.b32.xlu0 %v1749, 96
      %v1782 = vpop.permute.xlu0 %1781
      %1783 = vrot.lane.b32.xlu0 %v1750, 96
      %v1784 = vpop.permute.xlu0 %1783
      %1785 = vrot.lane.b32.xlu0 %v1751, 96
      %v1786 = vpop.permute.xlu0 %1785
      %1787 = vrot.lane.b32.xlu0 %v1752, 96
      %v1788 = vpop.permute.xlu0 %1787
      %1789 = vrot.lane.b32.xlu0 %v1753, 96
      %v1790 = vpop.permute.xlu0 %1789
      %1791 = vrot.lane.b32.xlu0 %v1754, 96
      %v1792 = vpop.permute.xlu0 %1791
      %1793 = vrot.lane.b32.xlu0 %v1755, 96
      %v1794 = vpop.permute.xlu0 %1793
      %1795 = vrot.lane.b32.xlu0 %v1756, 96
      %v1796 = vpop.permute.xlu0 %1795
      %1797 = vrot.lane.b32.xlu0 %v1757, 96
      %v1798 = vpop.permute.xlu0 %1797
      %1799 = vrot.lane.b32.xlu0 %v1758, 96
      %v1800 = vpop.permute.xlu0 %1799
      %1801 = vrot.lane.b32.xlu0 %v1759, 96
      %v1802 = vpop.permute.xlu0 %1801
      %1803 = vrot.lane.b32.xlu0 %v1760, 96
      %v1804 = vpop.permute.xlu0 %1803
      %1805 = vrot.lane.b32.xlu0 %v1761, 96
      %v1806 = vpop.permute.xlu0 %1805
      %1807 = vrot.lane.b32.xlu0 %v1762, 96
      %v1808 = vpop.permute.xlu0 %1807
      %1809 = vrot.lane.b32.xlu0 %v1763, 96
      %v1810 = vpop.permute.xlu0 %1809
      %1811 = vrot.lane.b32.xlu0 %v1764, 96
      %v1812 = vpop.permute.xlu0 %1811
      %1829 = vst.msk [vmem:[%s267] sm:$0xff] %vm293, %v1782
      %1830 = vst.msk [vmem:[%s267 + $0x8] sm:$0xff] %vm293, %v1784
      %1831 = vst.msk [vmem:[%s267 + $0x10] sm:$0xff] %vm293, %v1786
      %1832 = vst.msk [vmem:[%s267 + $0x18] sm:$0xff] %vm293, %v1788
      %1833 = vst.msk [vmem:[%s267 + $0x20] sm:$0xff] %vm293, %v1790
      %1834 = vst.msk [vmem:[%s267 + $0x28] sm:$0xff] %vm293, %v1792
      %1835 = vst.msk [vmem:[%s267 + $0x30] sm:$0xff] %vm293, %v1794
      %1836 = vst.msk [vmem:[%s267 + $0x38] sm:$0xff] %vm293, %v1796
      %1837 = vst.msk [vmem:[%s267 + $0x40] sm:$0xff] %vm293, %v1798
      %1838 = vst.msk [vmem:[%s267 + $0x48] sm:$0xff] %vm293, %v1800
      %1839 = vst.msk [vmem:[%s267 + $0x50] sm:$0xff] %vm293, %v1802
      %1840 = vst.msk [vmem:[%s267 + $0x58] sm:$0xff] %vm293, %v1804
      %1841 = vst.msk [vmem:[%s267 + $0x60] sm:$0xff] %vm293, %v1806
      %1842 = vst.msk [vmem:[%s267 + $0x68] sm:$0xff] %vm293, %v1808
      %1843 = vst.msk [vmem:[%s267 + $0x70] sm:$0xff] %vm293, %v1810
      %1844 = vst.msk [vmem:[%s267 + $0x78] sm:$0xff] %vm293, %v1812
      %s1845 = smul.u32 16, %s18
      %p1846 = scmp.lt.s32.totalorder %s1845, 31
      %s1847 = scalar_select %p1846, %s1845, 31
      %s1848 = smul.addr %s1847, 4
      %s1849 = scalar_lea.vmem %s5, %s1848
      %s1850 = smul.u32 16, %s18
      %p1851 = scmp.lt.s32.totalorder %s1850, 31
      %s1852 = scalar_select %p1851, %s1850, 31
      %s1853 = smul.addr %s1852, 8
      %s1854 = scalar_lea.vmem %s6, %s1853
      // Predicated region
      $region41: #{tpu_custom_call.1} parent=39 // pred_check
        %p1855 = pneg %p146
      $region42: #{tpu_custom_call.1} parent=39 // pred_check_branch
        %1857 = sbr.rel (%p1855) target = $region44
      $region43: #{tpu_custom_call.1} parent=39 // pred_region
        %s1858 = smul.u32 16, %s18
      $region44: #{tpu_custom_call.1} parent=39 // pred_fallthru
        _
      // Predicated region
      $region45: #{tpu_custom_call.1} parent=39 // pred_check
        %p1859 = pneg %p172
      $region46: #{tpu_custom_call.1} parent=39 // pred_check_branch
        %1861 = sbr.rel (%p1859) target = $region48
      $region47: #{tpu_custom_call.1} parent=39 // pred_region
        %s1862 = smul.u32 16, %s18
      $region48: #{tpu_custom_call.1} parent=39 // pred_fallthru
        _
    $region40: #{tpu_custom_call.1} parent=5 // pred_fallthru
      _
    %p1863 = scmp.le.s32.totalorder 2, %s13
    // Predicated region
    $region49: #{tpu_custom_call.1} parent=5 // pred_check
      %p1864 = pneg %p1863
    $region50: #{tpu_custom_call.1} parent=5 // pred_check_branch
      %1866 = sbr.rel (%p1864) target = $region52
    $region51: #{tpu_custom_call.1} parent=5 // pred_region
      %s1867 = ssub.s32 %s13, 2
      // Predicated region
      $region53: #{tpu_custom_call.1} parent=51 // pred_check
        %p1868 = pneg %p152
      $region54: #{tpu_custom_call.1} parent=51 // pred_check_branch
        %1870 = sbr.rel (%p1868) target = $region56
      $region55: #{tpu_custom_call.1} parent=51 // pred_region
        %s1871 = smul.u32 16, %s19
        %p1872 = scmp.lt.s32.totalorder %s1871, 31
        %s1873 = scalar_select %p1872, %s1871, 31
        %s1874 = smul.addr %s1873, 4
        %s1875 = scalar_lea.vmem %s5, %s1874
      $region56: #{tpu_custom_call.1} parent=51 // pred_fallthru
        _
      // Predicated region
      $region57: #{tpu_custom_call.1} parent=51 // pred_check
        %p1876 = pneg %p178
      $region58: #{tpu_custom_call.1} parent=51 // pred_check_branch
        %1878 = sbr.rel (%p1876) target = $region60
      $region59: #{tpu_custom_call.1} parent=51 // pred_region
        %s1879 = smul.u32 16, %s19
        %p1880 = scmp.lt.s32.totalorder %s1879, 31
        %s1881 = scalar_select %p1880, %s1879, 31
        %s1882 = smul.addr %s1881, 8
        %s1883 = scalar_lea.vmem %s6, %s1882
      $region60: #{tpu_custom_call.1} parent=51 // pred_fallthru
        _
    $region52: #{tpu_custom_call.1} parent=5 // pred_fallthru
      _
  $region6: #{tpu_custom_call.1} parent=0 // loop_footer
    %s17 = sadd.s32 1, %s13
  $region7: #{tpu_custom_call.1} parent=0 // loop_footer_branch
    %12 = sbr.rel target = $region3
  $region8: #{tpu_custom_call.1} parent=0 // loop_exit
    _

</llo_original>
